<compile_context>
chip_gen: v6e
topology: v6e:2x2x1
jax: 0.10.0
libtpu: 0.0.40
codegen_flags: <defaults>
</compile_context>

<pallas_src>
import functools

import jax
import jax.numpy as jnp
from jax.experimental import pallas as pl
from jax.experimental.pallas import tpu as pltpu

# Problem sizes: state dim, action dim, horizon, MLP hidden width.
NX, NU, H, HID = 4, 2, 4, 32
NXU = NX + NU
H2 = 2 * HID                      # width of each fused hidden block
XU_ROWS = 8                       # [x(4); u(2); 1; 0] input buffer rows

# --- packed-parameter slab layout (transposed blocks, 8-aligned rows, 64 lanes)
OFF_W_LF1 = 0      # [H2, 8]    first layers of l and f (bias folded, col 6)
OFF_W_MV1 = 64     # [H2, 8]    first layers of mu and V (bias folded, col 6)
OFF_W_LF2 = 128    # [5, H2]    block-diag second layers; output rows [x_next; l]
OFF_W_MV2 = 136    # [3, H2]    block-diag second layers; output rows [u; V]
OFF_B_LF2 = 144    # [5, 1]     second-layer biases [bf2; bl2]
OFF_B_MV2 = 152    # [3, 1]     second-layer biases [bm2; bv2]
SLAB_ROWS = 160
SLAB_COLS = 64

PARAM_ORDER = (
    # dynamics f(x, u) -> x_next        (first layer split: x-part / u-part)
    "wfx", "wfu", "bf1", "wf2", "bf2",
    # policy mu(x) -> u
    "wm1", "bm1", "wm2", "bm2",
    # stage cost l(x, u) -> scalar      (first layer split: x-part / u-part)
    "wlx", "wlu", "bl1", "wl2", "bl2",
    # terminal value V(x) -> scalar
    "wv1", "bv1", "wv2", "bv2",
)


def _round_up(n, m):
  return ((n + m - 1) // m) * m


def _num_tensorcores():
  """Heuristic TensorCore count per chip (only multi-TC chips want a grid split)."""
  try:
    kind = jax.devices()[0].device_kind.lower()
  except Exception:  # pragma: no cover - conservative fallback
    return 1
  for tag in ("v7", "tpu7", "v5p", "v4"):   # v7x: 2 TCs; v4/v5p: megacore
    if tag in kind:
      return 2
  return 1                                   # v5e / v6e / unknown: 1 TC


def _default_block_b(batch, num_cores):
  """Batch lanes per tile: as big as possible (cap 2048), split only for >1 TC."""
  bp = _round_up(max(batch, 1), 128)
  cap = 2048
  if num_cores > 1 and bp > 128:
    per_core = _round_up(-(-bp // num_cores), 128)
    return min(cap, per_core)
  return min(cap, bp)


def pack_params(p):
  """Pack the 18 per-layer parameters into one transposed [160, 64] f32 slab."""
  f32 = jnp.float32
  t = lambda a: jnp.asarray(a, f32).T

  # First layers, transposed, biases folded into column 6 (the constant-1 row).
  w_lf1 = jnp.zeros((H2, XU_ROWS), f32)
  w_lf1 = w_lf1.at[0:HID, 0:NX].set(t(p["wlx"]))
  w_lf1 = w_lf1.at[0:HID, NX:NXU].set(t(p["wlu"]))
  w_lf1 = w_lf1.at[0:HID, NXU:NXU + 1].set(t(p["bl1"]))
  w_lf1 = w_lf1.at[HID:H2, 0:NX].set(t(p["wfx"]))
  w_lf1 = w_lf1.at[HID:H2, NX:NXU].set(t(p["wfu"]))
  w_lf1 = w_lf1.at[HID:H2, NXU:NXU + 1].set(t(p["bf1"]))

  w_mv1 = jnp.zeros((H2, XU_ROWS), f32)          # u columns stay exactly zero
  w_mv1 = w_mv1.at[0:HID, 0:NX].set(t(p["wm1"]))
  w_mv1 = w_mv1.at[0:HID, NXU:NXU + 1].set(t(p["bm1"]))
  w_mv1 = w_mv1.at[HID:H2, 0:NX].set(t(p["wv1"]))
  w_mv1 = w_mv1.at[HID:H2, NXU:NXU + 1].set(t(p["bv1"]))

  # Second layers, transposed block-diagonal.  Output rows: [x_next(4); l(1)].
  w_lf2 = jnp.zeros((NX + 1, H2), f32)
  w_lf2 = w_lf2.at[0:NX, HID:H2].set(t(p["wf2"]))
  w_lf2 = w_lf2.at[NX:NX + 1, 0:HID].set(t(p["wl2"]))
  b_lf2 = jnp.concatenate([t(p["bf2"]), t(p["bl2"])], axis=0)      # [5, 1]

  # Output rows: [u(2); V(1)].
  w_mv2 = jnp.zeros((NU + 1, H2), f32)
  w_mv2 = w_mv2.at[0:NU, 0:HID].set(t(p["wm2"]))
  w_mv2 = w_mv2.at[NU:NU + 1, HID:H2].set(t(p["wv2"]))
  b_mv2 = jnp.concatenate([t(p["bm2"]), t(p["bv2"])], axis=0)      # [3, 1]

  slab = jnp.zeros((SLAB_ROWS, SLAB_COLS), f32)
  for off, arr in ((OFF_W_LF1, w_lf1), (OFF_W_MV1, w_mv1),
                   (OFF_W_LF2, w_lf2), (OFF_W_MV2, w_mv2),
                   (OFF_B_LF2, b_lf2), (OFF_B_MV2, b_mv2)):
    r, c = arr.shape
    slab = slab.at[off:off + r, 0:c].set(arr)
  return slab


def _mpcritic_kernel(*refs, use_action: bool, horizon: int):
  """One batch tile (batch on lanes): H+1 fused rollout steps + terminal V, negated."""
  if use_action:
    s_ref, a_ref, p_ref, q_ref, xu_ref = refs
  else:
    s_ref, p_ref, q_ref, xu_ref = refs
  f32 = jnp.float32
  bb = s_ref.shape[1]

  # Hoisted transposed weights (loaded once; a handful of vregs total).
  w_lf1 = p_ref[OFF_W_LF1:OFF_W_LF1 + H2, 0:XU_ROWS]        # [64, 8]
  w_mv1 = p_ref[OFF_W_MV1:OFF_W_MV1 + H2, 0:XU_ROWS]        # [64, 8]
  w_lf2 = p_ref[OFF_W_LF2:OFF_W_LF2 + NX + 1, 0:H2]         # [5, 64]
  w_mv2 = p_ref[OFF_W_MV2:OFF_W_MV2 + NU + 1, 0:H2]         # [3, 64]
  # Tiny second-layer biases, pre-broadcast across lanes ONCE (outside the loop).
  b_lf2 = jnp.broadcast_to(p_ref[OFF_B_LF2:OFF_B_LF2 + NX + 1, 0:1], (NX + 1, bb))
  b_mv2 = jnp.broadcast_to(p_ref[OFF_B_MV2:OFF_B_MV2 + NU + 1, 0:1], (NU + 1, bb))

  ones_row = jnp.ones((1, bb), f32)
  zeros_row = jnp.zeros((1, bb), f32)

  def mv_head(xu):
    """Fused mu/V trunk on the xu buffer (u rows have zero weight; bias via row 6)."""
    h = jnp.tanh(jnp.dot(w_mv1, xu, preferred_element_type=f32))  # [64, bb]
    out = jnp.dot(w_mv2, h, preferred_element_type=f32) + b_mv2   # [u; V]
    return jnp.tanh(out[0:NU, :]), out[NU:NU + 1, :]

  x0 = s_ref[...].astype(f32)                                     # [4, bb]
  if use_action:                        # forward_critic_sa: u_0 = a
    u0 = a_ref[...].astype(f32)
    xu_ref[...] = jnp.concatenate([x0, u0, ones_row, zeros_row], axis=0)
  else:                                 # forward_critic_s : u_0 = mu(s)
    xu_ref[...] = jnp.concatenate(
        [x0, jnp.zeros((NU, bb), f32), ones_row, zeros_row], axis=0)
    u0, _ = mv_head(xu_ref[...])
    xu_ref[NX:NXU, :] = u0

  cost = jnp.zeros((1, bb), f32)
  value = jnp.zeros((1, bb), f32)
  # Static unrolled rollout (H is a Python int); 4 MXU ops per step,
  # first-layer biases folded into the constant-1 row of the xu buffer.
  for _ in range(horizon + 1):
    xu = xu_ref[...]                                               # [8, bb]
    h = jnp.tanh(jnp.dot(w_lf1, xu, preferred_element_type=f32))   # [64, bb]
    out = jnp.dot(w_lf2, h, preferred_element_type=f32) + b_lf2    # [x_next; l]
    cost = cost + out[NX:NX + 1, :]                                # stage cost
    xu_ref[0:NX, :] = out[0:NX, :]                                 # x <- x_next
    u_next, value = mv_head(xu_ref[...])   # value only consumed after last step
    xu_ref[NX:NXU, :] = u_next                                     # u <- mu(x_next)

  q_ref[...] = (-(cost + value)).astype(q_ref.dtype)               # [1, bb]


def mpcritic_forward(s, a, params, *, block_b=None, num_cores=None):
  """Batched critic: q = MPCritic.forward(s, a).  `a` may be None.  s:[B,NX]."""
  B = s.shape[0]
  use_action = a is not None
  slab = pack_params(params) if isinstance(params, dict) else params

  if num_cores is None:
    num_cores = _num_tensorcores()
  if block_b is None:
    block_b = _default_block_b(B, num_cores)
  block_b = max(128, _round_up(block_b, 128))
  Bp = _round_up(B, block_b)

  # Batch-on-lanes layout: transpose (and zero-pad lanes) at the wrapper edge.
  sT = jnp.pad(s.T.astype(jnp.float32), ((0, 0), (0, Bp - B)))     # [NX, Bp]
  inputs = [sT]
  in_specs = [pl.BlockSpec((NX, block_b), lambda b: (0, b))]
  if use_action:
    aT = jnp.pad(a.T.astype(jnp.float32), ((0, 0), (0, Bp - B)))   # [NU, Bp]
    inputs.append(aT)
    in_specs.append(pl.BlockSpec((NU, block_b), lambda b: (0, b)))
  # Single resident parameter slab (constant index_map -> fetched once).
  in_specs.append(pl.BlockSpec((SLAB_ROWS, SLAB_COLS), lambda b: (0, 0)))
  inputs.append(slab)

  kernel = functools.partial(_mpcritic_kernel, use_action=use_action, horizon=H)

  q = pl.pallas_call(
      kernel,
      out_shape=jax.ShapeDtypeStruct((1, Bp), jnp.float32),
      grid_spec=pltpu.PrefetchScalarGridSpec(
          num_scalar_prefetch=0,
          grid=(Bp // block_b,),
          in_specs=in_specs,
          out_specs=pl.BlockSpec((1, block_b), lambda b: (0, b)),
          scratch_shapes=[pltpu.VMEM((XU_ROWS, block_b), jnp.float32)],
      ),
      compiler_params=pltpu.CompilerParams(
          dimension_semantics=("parallel",)),
  )(*inputs)
  return q[0, :B].reshape(B, 1)


def init_params(key):
  shapes = {
      "wfx": (NX, HID), "wfu": (NU, HID), "bf1": (1, HID), "wf2": (HID, NX), "bf2": (1, NX),
      "wm1": (NX, HID), "bm1": (1, HID), "wm2": (HID, NU), "bm2": (1, NU),
      "wlx": (NX, HID), "wlu": (NU, HID), "bl1": (1, HID), "wl2": (HID, 1), "bl2": (1, 1),
      "wv1": (NX, HID), "bv1": (1, HID), "wv2": (HID, 1), "bv2": (1, 1),
  }
  params = {}
  for name in PARAM_ORDER:
    key, sub = jax.random.split(key)
    params[name] = 0.3 * jax.random.normal(sub, shapes[name], jnp.float32)
  return params


def mpcritic_reference(s, a, p):
  """Pure-JAX reference with the original (unfused) math, for correctness."""
  mu = lambda x: jnp.tanh(jnp.tanh(x @ p["wm1"] + p["bm1"]) @ p["wm2"] + p["bm2"])
  dyn = lambda x, u: jnp.tanh(x @ p["wfx"] + u @ p["wfu"] + p["bf1"]) @ p["wf2"] + p["bf2"]
  lc = lambda x, u: jnp.tanh(x @ p["wlx"] + u @ p["wlu"] + p["bl1"]) @ p["wl2"] + p["bl2"]
  vf = lambda x: jnp.tanh(x @ p["wv1"] + p["bv1"]) @ p["wv2"] + p["bv2"]
  x = s
  u = a if a is not None else mu(s)
  cost = jnp.zeros((s.shape[0], 1), jnp.float32)
  for _ in range(H + 1):
    cost = cost + lc(x, u)
    x = dyn(x, u)
    u = mu(x)
  return -(cost + vf(x))


if __name__ == "__main__":
  key = jax.random.PRNGKey(0)
  kp, ks, ka = jax.random.split(key, 3)
  params = init_params(kp)

  B = 16
  s = jax.random.normal(ks, (B, NX), jnp.float32)
  a = jax.random.normal(ka, (B, NU), jnp.float32)

  q_sa = jax.block_until_ready(mpcritic_forward(s, a, params))     # critic(s, a)
  q_s = jax.block_until_ready(mpcritic_forward(s, None, params))   # critic(s, mu(s))

  ref_sa = mpcritic_reference(s, a, params)
  ref_s = mpcritic_reference(s, None, params)

  assert q_sa.shape == (B, 1) and q_s.shape == (B, 1)
  assert jnp.allclose(q_sa, ref_sa, atol=1e-4, rtol=1e-4)
  assert jnp.allclose(q_s, ref_s, atol=1e-4, rtol=1e-4)

  # Ragged batch exercises the lane padding / remainder path.
  q13 = jax.block_until_ready(mpcritic_forward(s[:13], a[:13], params))
  assert q13.shape == (13, 1)
  assert jnp.allclose(q13, ref_sa[:13], atol=1e-4, rtol=1e-4)

  print("KERNEL_OK")
</pallas_src>

<mosaic_0001>
module attributes {stable_mosaic.version = 11 : i64} {
  func.func @_mpcritic_kernel(%arg0: i32, %arg1: memref<4x128xf32, #tpu.memory_space<vmem>>, %arg2: memref<2x128xf32, #tpu.memory_space<vmem>>, %arg3: memref<160x64xf32, #tpu.memory_space<vmem>>, %arg4: memref<1x128xf32, #tpu.memory_space<vmem>>, %arg5: memref<8x128xf32, #tpu.memory_space<vmem>>) attributes {dimension_semantics = [#tpu.dimension_semantics<parallel>], iteration_bounds = array<i64: 1>, scalar_prefetch = 0 : i64, scratch_operands = 1 : i64, tpu.core_type = #tpu.core_type<tc>, window_params = [{transform_indices = @transform_0, window_bounds = array<i64: 4, 128>}, {transform_indices = @transform_1, window_bounds = array<i64: 2, 128>}, {pipeline_mode = #tpu.pipeline_mode<synchronous>, transform_indices = @transform_2, window_bounds = array<i64: 160, 64>}, {transform_indices = @transform_3, window_bounds = array<i64: 1, 128>}]} {
    %c0 = arith.constant 0 : index
    %c0_0 = arith.constant 0 : index
    %0 = vector.load %arg3[%c0, %c0_0] : memref<160x64xf32, #tpu.memory_space<vmem>>, vector<64x8xf32>
    %c64 = arith.constant 64 : index
    %c0_1 = arith.constant 0 : index
    %1 = vector.load %arg3[%c64, %c0_1] : memref<160x64xf32, #tpu.memory_space<vmem>>, vector<64x8xf32>
    %c128 = arith.constant 128 : index
    %c0_2 = arith.constant 0 : index
    %2 = vector.load %arg3[%c128, %c0_2] : memref<160x64xf32, #tpu.memory_space<vmem>>, vector<5x64xf32>
    %c136 = arith.constant 136 : index
    %c0_3 = arith.constant 0 : index
    %3 = vector.load %arg3[%c136, %c0_3] : memref<160x64xf32, #tpu.memory_space<vmem>>, vector<3x64xf32>
    %c144 = arith.constant 144 : index
    %c0_4 = arith.constant 0 : index
    %4 = vector.load %arg3[%c144, %c0_4] : memref<160x64xf32, #tpu.memory_space<vmem>>, vector<5x1xf32>
    %5 = vector.shape_cast %4 : vector<5x1xf32> to vector<5x1xf32>
    %6 = vector.broadcast %5 : vector<5x1xf32> to vector<5x128xf32>
    %c152 = arith.constant 152 : index
    %c0_5 = arith.constant 0 : index
    %7 = vector.load %arg3[%c152, %c0_5] : memref<160x64xf32, #tpu.memory_space<vmem>>, vector<3x1xf32>
    %8 = vector.shape_cast %7 : vector<3x1xf32> to vector<3x1xf32>
    %9 = vector.broadcast %8 : vector<3x1xf32> to vector<3x128xf32>
    %cst = arith.constant 1.000000e+00 : f32
    %10 = vector.broadcast %cst : f32 to vector<1x128xf32>
    %cst_6 = arith.constant 0.000000e+00 : f32
    %11 = vector.broadcast %cst_6 : f32 to vector<1x128xf32>
    %c0_7 = arith.constant 0 : index
    %c0_8 = arith.constant 0 : index
    %12 = vector.load %arg1[%c0_7, %c0_8] : memref<4x128xf32, #tpu.memory_space<vmem>>, vector<4x128xf32>
    %c0_9 = arith.constant 0 : index
    %c0_10 = arith.constant 0 : index
    %13 = vector.load %arg2[%c0_9, %c0_10] : memref<2x128xf32, #tpu.memory_space<vmem>>, vector<2x128xf32>
    %14 = tpu.concatenate %12, %13, %10, %11 in 0 : vector<4x128xf32>, vector<2x128xf32>, vector<1x128xf32>, vector<1x128xf32> -> vector<8x128xf32>
    %c0_11 = arith.constant 0 : index
    %c0_12 = arith.constant 0 : index
    %15 = vector.load %arg5[%c0_11, %c0_12] : memref<8x128xf32, #tpu.memory_space<vmem>>, vector<8x128xf32>
    tpu.vector_store %arg5[%c0_11, %c0_12], %14 {strides = array<i32>} : memref<8x128xf32, #tpu.memory_space<vmem>>, vector<8x128xf32>,
    %cst_13 = arith.constant 0.000000e+00 : f32
    %16 = vector.broadcast %cst_13 : f32 to vector<1x128xf32>
    %c0_14 = arith.constant 0 : index
    %c0_15 = arith.constant 0 : index
    %17 = vector.load %arg5[%c0_14, %c0_15] : memref<8x128xf32, #tpu.memory_space<vmem>>, vector<8x128xf32>
    %cst_16 = arith.constant dense<0.000000e+00> : vector<64x128xf32>
    %18 = tpu.matmul %0, %17, %cst_16 {dimension_numbers = #tpu.dot_dimension_numbers<[1], [0], [0], [1], [0, 0, 1, 1], [], []>} : vector<64x8xf32>, vector<8x128xf32>, vector<64x128xf32> -> vector<64x128xf32>
    %19 = math.tanh %18 : vector<64x128xf32>
    %cst_17 = arith.constant dense<0.000000e+00> : vector<5x128xf32>
    %20 = tpu.matmul %2, %19, %cst_17 {dimension_numbers = #tpu.dot_dimension_numbers<[1], [0], [0], [1], [0, 0, 1, 1], [], []>} : vector<5x64xf32>, vector<64x128xf32>, vector<5x128xf32> -> vector<5x128xf32>
    %21 = arith.addf %20, %6 : vector<5x128xf32>
    %22 = vector.extract_strided_slice %21 {offsets = [4, 0], sizes = [1, 128], strides = [1, 1]} : vector<5x128xf32> to vector<1x128xf32>
    %23 = arith.addf %16, %22 : vector<1x128xf32>
    %24 = vector.extract_strided_slice %21 {offsets = [0, 0], sizes = [4, 128], strides = [1, 1]} : vector<5x128xf32> to vector<4x128xf32>
    %c0_18 = arith.constant 0 : index
    %c0_19 = arith.constant 0 : index
    %25 = vector.load %arg5[%c0_18, %c0_19] : memref<8x128xf32, #tpu.memory_space<vmem>>, vector<4x128xf32>
    tpu.vector_store %arg5[%c0_18, %c0_19], %24 {strides = array<i32>} : memref<8x128xf32, #tpu.memory_space<vmem>>, vector<4x128xf32>,
    %c0_20 = arith.constant 0 : index
    %c0_21 = arith.constant 0 : index
    %26 = vector.load %arg5[%c0_20, %c0_21] : memref<8x128xf32, #tpu.memory_space<vmem>>, vector<8x128xf32>
    %cst_22 = arith.constant dense<0.000000e+00> : vector<64x128xf32>
    %27 = tpu.matmul %1, %26, %cst_22 {dimension_numbers = #tpu.dot_dimension_numbers<[1], [0], [0], [1], [0, 0, 1, 1], [], []>} : vector<64x8xf32>, vector<8x128xf32>, vector<64x128xf32> -> vector<64x128xf32>
    %28 = math.tanh %27 : vector<64x128xf32>
    %cst_23 = arith.constant dense<0.000000e+00> : vector<3x128xf32>
    %29 = tpu.matmul %3, %28, %cst_23 {dimension_numbers = #tpu.dot_dimension_numbers<[1], [0], [0], [1], [0, 0, 1, 1], [], []>} : vector<3x64xf32>, vector<64x128xf32>, vector<3x128xf32> -> vector<3x128xf32>
    %30 = arith.addf %29, %9 : vector<3x128xf32>
    %31 = vector.extract_strided_slice %30 {offsets = [0, 0], sizes = [2, 128], strides = [1, 1]} : vector<3x128xf32> to vector<2x128xf32>
    %32 = math.tanh %31 : vector<2x128xf32>
    %c4 = arith.constant 4 : index
    %c0_24 = arith.constant 0 : index
    %33 = vector.load %arg5[%c4, %c0_24] : memref<8x128xf32, #tpu.memory_space<vmem>>, vector<2x128xf32>
    tpu.vector_store %arg5[%c4, %c0_24], %32 {strides = array<i32>} : memref<8x128xf32, #tpu.memory_space<vmem>>, vector<2x128xf32>,
    %c0_25 = arith.constant 0 : index
    %c0_26 = arith.constant 0 : index
    %34 = vector.load %arg5[%c0_25, %c0_26] : memref<8x128xf32, #tpu.memory_space<vmem>>, vector<8x128xf32>
    %cst_27 = arith.constant dense<0.000000e+00> : vector<64x128xf32>
    %35 = tpu.matmul %0, %34, %cst_27 {dimension_numbers = #tpu.dot_dimension_numbers<[1], [0], [0], [1], [0, 0, 1, 1], [], []>} : vector<64x8xf32>, vector<8x128xf32>, vector<64x128xf32> -> vector<64x128xf32>
    %36 = math.tanh %35 : vector<64x128xf32>
    %cst_28 = arith.constant dense<0.000000e+00> : vector<5x128xf32>
    %37 = tpu.matmul %2, %36, %cst_28 {dimension_numbers = #tpu.dot_dimension_numbers<[1], [0], [0], [1], [0, 0, 1, 1], [], []>} : vector<5x64xf32>, vector<64x128xf32>, vector<5x128xf32> -> vector<5x128xf32>
    %38 = arith.addf %37, %6 : vector<5x128xf32>
    %39 = vector.extract_strided_slice %38 {offsets = [4, 0], sizes = [1, 128], strides = [1, 1]} : vector<5x128xf32> to vector<1x128xf32>
    %40 = arith.addf %23, %39 : vector<1x128xf32>
    %41 = vector.extract_strided_slice %38 {offsets = [0, 0], sizes = [4, 128], strides = [1, 1]} : vector<5x128xf32> to vector<4x128xf32>
    %c0_29 = arith.constant 0 : index
    %c0_30 = arith.constant 0 : index
    %42 = vector.load %arg5[%c0_29, %c0_30] : memref<8x128xf32, #tpu.memory_space<vmem>>, vector<4x128xf32>
    tpu.vector_store %arg5[%c0_29, %c0_30], %41 {strides = array<i32>} : memref<8x128xf32, #tpu.memory_space<vmem>>, vector<4x128xf32>,
    %c0_31 = arith.constant 0 : index
    %c0_32 = arith.constant 0 : index
    %43 = vector.load %arg5[%c0_31, %c0_32] : memref<8x128xf32, #tpu.memory_space<vmem>>, vector<8x128xf32>
    %cst_33 = arith.constant dense<0.000000e+00> : vector<64x128xf32>
    %44 = tpu.matmul %1, %43, %cst_33 {dimension_numbers = #tpu.dot_dimension_numbers<[1], [0], [0], [1], [0, 0, 1, 1], [], []>} : vector<64x8xf32>, vector<8x128xf32>, vector<64x128xf32> -> vector<64x128xf32>
    %45 = math.tanh %44 : vector<64x128xf32>
    %cst_34 = arith.constant dense<0.000000e+00> : vector<3x128xf32>
    %46 = tpu.matmul %3, %45, %cst_34 {dimension_numbers = #tpu.dot_dimension_numbers<[1], [0], [0], [1], [0, 0, 1, 1], [], []>} : vector<3x64xf32>, vector<64x128xf32>, vector<3x128xf32> -> vector<3x128xf32>
    %47 = arith.addf %46, %9 : vector<3x128xf32>
    %48 = vector.extract_strided_slice %47 {offsets = [0, 0], sizes = [2, 128], strides = [1, 1]} : vector<3x128xf32> to vector<2x128xf32>
    %49 = math.tanh %48 : vector<2x128xf32>
    %c4_35 = arith.constant 4 : index
    %c0_36 = arith.constant 0 : index
    %50 = vector.load %arg5[%c4_35, %c0_36] : memref<8x128xf32, #tpu.memory_space<vmem>>, vector<2x128xf32>
    tpu.vector_store %arg5[%c4_35, %c0_36], %49 {strides = array<i32>} : memref<8x128xf32, #tpu.memory_space<vmem>>, vector<2x128xf32>,
    %c0_37 = arith.constant 0 : index
    %c0_38 = arith.constant 0 : index
    %51 = vector.load %arg5[%c0_37, %c0_38] : memref<8x128xf32, #tpu.memory_space<vmem>>, vector<8x128xf32>
    %cst_39 = arith.constant dense<0.000000e+00> : vector<64x128xf32>
    %52 = tpu.matmul %0, %51, %cst_39 {dimension_numbers = #tpu.dot_dimension_numbers<[1], [0], [0], [1], [0, 0, 1, 1], [], []>} : vector<64x8xf32>, vector<8x128xf32>, vector<64x128xf32> -> vector<64x128xf32>
    %53 = math.tanh %52 : vector<64x128xf32>
    %cst_40 = arith.constant dense<0.000000e+00> : vector<5x128xf32>
    %54 = tpu.matmul %2, %53, %cst_40 {dimension_numbers = #tpu.dot_dimension_numbers<[1], [0], [0], [1], [0, 0, 1, 1], [], []>} : vector<5x64xf32>, vector<64x128xf32>, vector<5x128xf32> -> vector<5x128xf32>
    %55 = arith.addf %54, %6 : vector<5x128xf32>
    %56 = vector.extract_strided_slice %55 {offsets = [4, 0], sizes = [1, 128], strides = [1, 1]} : vector<5x128xf32> to vector<1x128xf32>
    %57 = arith.addf %40, %56 : vector<1x128xf32>
    %58 = vector.extract_strided_slice %55 {offsets = [0, 0], sizes = [4, 128], strides = [1, 1]} : vector<5x128xf32> to vector<4x128xf32>
    %c0_41 = arith.constant 0 : index
    %c0_42 = arith.constant 0 : index
    %59 = vector.load %arg5[%c0_41, %c0_42] : memref<8x128xf32, #tpu.memory_space<vmem>>, vector<4x128xf32>
    tpu.vector_store %arg5[%c0_41, %c0_42], %58 {strides = array<i32>} : memref<8x128xf32, #tpu.memory_space<vmem>>, vector<4x128xf32>,
    %c0_43 = arith.constant 0 : index
    %c0_44 = arith.constant 0 : index
    %60 = vector.load %arg5[%c0_43, %c0_44] : memref<8x128xf32, #tpu.memory_space<vmem>>, vector<8x128xf32>
    %cst_45 = arith.constant dense<0.000000e+00> : vector<64x128xf32>
    %61 = tpu.matmul %1, %60, %cst_45 {dimension_numbers = #tpu.dot_dimension_numbers<[1], [0], [0], [1], [0, 0, 1, 1], [], []>} : vector<64x8xf32>, vector<8x128xf32>, vector<64x128xf32> -> vector<64x128xf32>
    %62 = math.tanh %61 : vector<64x128xf32>
    %cst_46 = arith.constant dense<0.000000e+00> : vector<3x128xf32>
    %63 = tpu.matmul %3, %62, %cst_46 {dimension_numbers = #tpu.dot_dimension_numbers<[1], [0], [0], [1], [0, 0, 1, 1], [], []>} : vector<3x64xf32>, vector<64x128xf32>, vector<3x128xf32> -> vector<3x128xf32>
    %64 = arith.addf %63, %9 : vector<3x128xf32>
    %65 = vector.extract_strided_slice %64 {offsets = [0, 0], sizes = [2, 128], strides = [1, 1]} : vector<3x128xf32> to vector<2x128xf32>
    %66 = math.tanh %65 : vector<2x128xf32>
    %c4_47 = arith.constant 4 : index
    %c0_48 = arith.constant 0 : index
    %67 = vector.load %arg5[%c4_47, %c0_48] : memref<8x128xf32, #tpu.memory_space<vmem>>, vector<2x128xf32>
    tpu.vector_store %arg5[%c4_47, %c0_48], %66 {strides = array<i32>} : memref<8x128xf32, #tpu.memory_space<vmem>>, vector<2x128xf32>,
    %c0_49 = arith.constant 0 : index
    %c0_50 = arith.constant 0 : index
    %68 = vector.load %arg5[%c0_49, %c0_50] : memref<8x128xf32, #tpu.memory_space<vmem>>, vector<8x128xf32>
    %cst_51 = arith.constant dense<0.000000e+00> : vector<64x128xf32>
    %69 = tpu.matmul %0, %68, %cst_51 {dimension_numbers = #tpu.dot_dimension_numbers<[1], [0], [0], [1], [0, 0, 1, 1], [], []>} : vector<64x8xf32>, vector<8x128xf32>, vector<64x128xf32> -> vector<64x128xf32>
    %70 = math.tanh %69 : vector<64x128xf32>
    %cst_52 = arith.constant dense<0.000000e+00> : vector<5x128xf32>
    %71 = tpu.matmul %2, %70, %cst_52 {dimension_numbers = #tpu.dot_dimension_numbers<[1], [0], [0], [1], [0, 0, 1, 1], [], []>} : vector<5x64xf32>, vector<64x128xf32>, vector<5x128xf32> -> vector<5x128xf32>
    %72 = arith.addf %71, %6 : vector<5x128xf32>
    %73 = vector.extract_strided_slice %72 {offsets = [4, 0], sizes = [1, 128], strides = [1, 1]} : vector<5x128xf32> to vector<1x128xf32>
    %74 = arith.addf %57, %73 : vector<1x128xf32>
    %75 = vector.extract_strided_slice %72 {offsets = [0, 0], sizes = [4, 128], strides = [1, 1]} : vector<5x128xf32> to vector<4x128xf32>
    %c0_53 = arith.constant 0 : index
    %c0_54 = arith.constant 0 : index
    %76 = vector.load %arg5[%c0_53, %c0_54] : memref<8x128xf32, #tpu.memory_space<vmem>>, vector<4x128xf32>
    tpu.vector_store %arg5[%c0_53, %c0_54], %75 {strides = array<i32>} : memref<8x128xf32, #tpu.memory_space<vmem>>, vector<4x128xf32>,
    %c0_55 = arith.constant 0 : index
    %c0_56 = arith.constant 0 : index
    %77 = vector.load %arg5[%c0_55, %c0_56] : memref<8x128xf32, #tpu.memory_space<vmem>>, vector<8x128xf32>
    %cst_57 = arith.constant dense<0.000000e+00> : vector<64x128xf32>
    %78 = tpu.matmul %1, %77, %cst_57 {dimension_numbers = #tpu.dot_dimension_numbers<[1], [0], [0], [1], [0, 0, 1, 1], [], []>} : vector<64x8xf32>, vector<8x128xf32>, vector<64x128xf32> -> vector<64x128xf32>
    %79 = math.tanh %78 : vector<64x128xf32>
    %cst_58 = arith.constant dense<0.000000e+00> : vector<3x128xf32>
    %80 = tpu.matmul %3, %79, %cst_58 {dimension_numbers = #tpu.dot_dimension_numbers<[1], [0], [0], [1], [0, 0, 1, 1], [], []>} : vector<3x64xf32>, vector<64x128xf32>, vector<3x128xf32> -> vector<3x128xf32>
    %81 = arith.addf %80, %9 : vector<3x128xf32>
    %82 = vector.extract_strided_slice %81 {offsets = [0, 0], sizes = [2, 128], strides = [1, 1]} : vector<3x128xf32> to vector<2x128xf32>
    %83 = math.tanh %82 : vector<2x128xf32>
    %c4_59 = arith.constant 4 : index
    %c0_60 = arith.constant 0 : index
    %84 = vector.load %arg5[%c4_59, %c0_60] : memref<8x128xf32, #tpu.memory_space<vmem>>, vector<2x128xf32>
    tpu.vector_store %arg5[%c4_59, %c0_60], %83 {strides = array<i32>} : memref<8x128xf32, #tpu.memory_space<vmem>>, vector<2x128xf32>,
    %c0_61 = arith.constant 0 : index
    %c0_62 = arith.constant 0 : index
    %85 = vector.load %arg5[%c0_61, %c0_62] : memref<8x128xf32, #tpu.memory_space<vmem>>, vector<8x128xf32>
    %cst_63 = arith.constant dense<0.000000e+00> : vector<64x128xf32>
    %86 = tpu.matmul %0, %85, %cst_63 {dimension_numbers = #tpu.dot_dimension_numbers<[1], [0], [0], [1], [0, 0, 1, 1], [], []>} : vector<64x8xf32>, vector<8x128xf32>, vector<64x128xf32> -> vector<64x128xf32>
    %87 = math.tanh %86 : vector<64x128xf32>
    %cst_64 = arith.constant dense<0.000000e+00> : vector<5x128xf32>
    %88 = tpu.matmul %2, %87, %cst_64 {dimension_numbers = #tpu.dot_dimension_numbers<[1], [0], [0], [1], [0, 0, 1, 1], [], []>} : vector<5x64xf32>, vector<64x128xf32>, vector<5x128xf32> -> vector<5x128xf32>
    %89 = arith.addf %88, %6 : vector<5x128xf32>
    %90 = vector.extract_strided_slice %89 {offsets = [4, 0], sizes = [1, 128], strides = [1, 1]} : vector<5x128xf32> to vector<1x128xf32>
    %91 = arith.addf %74, %90 : vector<1x128xf32>
    %92 = vector.extract_strided_slice %89 {offsets = [0, 0], sizes = [4, 128], strides = [1, 1]} : vector<5x128xf32> to vector<4x128xf32>
    %c0_65 = arith.constant 0 : index
    %c0_66 = arith.constant 0 : index
    %93 = vector.load %arg5[%c0_65, %c0_66] : memref<8x128xf32, #tpu.memory_space<vmem>>, vector<4x128xf32>
    tpu.vector_store %arg5[%c0_65, %c0_66], %92 {strides = array<i32>} : memref<8x128xf32, #tpu.memory_space<vmem>>, vector<4x128xf32>,
    %c0_67 = arith.constant 0 : index
    %c0_68 = arith.constant 0 : index
    %94 = vector.load %arg5[%c0_67, %c0_68] : memref<8x128xf32, #tpu.memory_space<vmem>>, vector<8x128xf32>
    %cst_69 = arith.constant dense<0.000000e+00> : vector<64x128xf32>
    %95 = tpu.matmul %1, %94, %cst_69 {dimension_numbers = #tpu.dot_dimension_numbers<[1], [0], [0], [1], [0, 0, 1, 1], [], []>} : vector<64x8xf32>, vector<8x128xf32>, vector<64x128xf32> -> vector<64x128xf32>
    %96 = math.tanh %95 : vector<64x128xf32>
    %cst_70 = arith.constant dense<0.000000e+00> : vector<3x128xf32>
    %97 = tpu.matmul %3, %96, %cst_70 {dimension_numbers = #tpu.dot_dimension_numbers<[1], [0], [0], [1], [0, 0, 1, 1], [], []>} : vector<3x64xf32>, vector<64x128xf32>, vector<3x128xf32> -> vector<3x128xf32>
    %98 = arith.addf %97, %9 : vector<3x128xf32>
    %99 = vector.extract_strided_slice %98 {offsets = [0, 0], sizes = [2, 128], strides = [1, 1]} : vector<3x128xf32> to vector<2x128xf32>
    %100 = math.tanh %99 : vector<2x128xf32>
    %101 = vector.extract_strided_slice %98 {offsets = [2, 0], sizes = [1, 128], strides = [1, 1]} : vector<3x128xf32> to vector<1x128xf32>
    %c4_71 = arith.constant 4 : index
    %c0_72 = arith.constant 0 : index
    %102 = vector.load %arg5[%c4_71, %c0_72] : memref<8x128xf32, #tpu.memory_space<vmem>>, vector<2x128xf32>
    tpu.vector_store %arg5[%c4_71, %c0_72], %100 {strides = array<i32>} : memref<8x128xf32, #tpu.memory_space<vmem>>, vector<2x128xf32>,
    %103 = arith.addf %91, %101 : vector<1x128xf32>
    %cst_73 = arith.constant 0.000000e+00 : f32
    %104 = vector.broadcast %cst_73 : f32 to vector<1x128xf32>
    %105 = arith.subf %104, %103 : vector<1x128xf32>
    %c0_74 = arith.constant 0 : index
    %c0_75 = arith.constant 0 : index
    %106 = vector.load %arg4[%c0_74, %c0_75] : memref<1x128xf32, #tpu.memory_space<vmem>>, vector<1x128xf32>
    tpu.vector_store %arg4[%c0_74, %c0_75], %105 {strides = array<i32>} : memref<1x128xf32, #tpu.memory_space<vmem>>, vector<1x128xf32>,
    return
  }
  func.func @transform_0(%arg0: i32) -> (i32, i32) {
    %c0_i32 = arith.constant 0 : i32
    %c0_i32_0 = arith.constant 0 : i32
    return %c0_i32, %arg0 : i32, i32
  }
  func.func @transform_1(%arg0: i32) -> (i32, i32) {
    %c0_i32 = arith.constant 0 : i32
    %c0_i32_0 = arith.constant 0 : i32
    return %c0_i32, %arg0 : i32, i32
  }
  func.func @transform_2(%arg0: i32) -> (i32, i32) {
    %c0_i32 = arith.constant 0 : i32
    %c0_i32_0 = arith.constant 0 : i32
    %c0_i32_1 = arith.constant 0 : i32
    return %c0_i32, %c0_i32_0 : i32, i32
  }
  func.func @transform_3(%arg0: i32) -> (i32, i32) {
    %c0_i32 = arith.constant 0 : i32
    %c0_i32_0 = arith.constant 0 : i32
    return %c0_i32, %arg0 : i32, i32
  }
}

</mosaic_0001>

<llo_original>
// kernel: tpu_custom_call.1
$region0: #{tpu_custom_call.1}
  #allocation0 [shape = 'u32[]', space=smem, size = 0x4, offset = 0x4, fixed_abs, tag = 'smem constant byte address 0x4 - core index']
  #allocation1 [shape = 'u32[144,128]{1,0:T(1,128)}', space=vmem, size = 0x12000, scoped, tag = 'internal scratch']
  #allocation2 [shape = 'f32[8,128]{1,0:T(8,128)}', space=vmem, size = 0x1000, scoped, tag = 'scratch operand']
  %s0 = inlined_call_operand.vmem [shape: f32[4,128], index: 0, kind: input, shape index: {}]
  %s1 = inlined_call_operand.vmem [shape: f32[2,128], index: 1, kind: input, shape index: {}]
  %s2 = inlined_call_operand.vmem [shape: f32[160,64], index: 2, kind: input, shape index: {}]
  %s3 = inlined_call_operand.hbm [shape: f32[1,128], index: 3, kind: output, shape index: {}]
  %s4 = sld [smem:[#allocation0]]
  $region22: #{tpu_custom_call.1} parent=0
    _
  %s6 = ssub.s32 1, %s4
  %s7 = scalar_select 0, %s6, %s4
  $region1: #{tpu_custom_call.1} parent=0
    #allocation3 [shape = 'u8[512]{0}', space=vmem, size = 0x400, scoped, tag = 'output window, operand 0, single buffered']
    #allocation4 [shape = 's32[1]{0}', space=sflag, size = 0x4, scoped, tag = 'scoped memory for tpu_custom_call.1']
    %8 = vsyncpa [#allocation4], 0
    // Predicated region
    $region2: #{tpu_custom_call.1} parent=1 // pred_check
      _
    $region3: #{tpu_custom_call.1} parent=1 // pred_check_branch
      %10 = sbr.rel (0) target = $region5
    $region4: #{tpu_custom_call.1} parent=1 // pred_region
      _
    $region5: #{tpu_custom_call.1} parent=1 // pred_fallthru
      _
    // Predicated region
    $region6: #{tpu_custom_call.1} parent=1 // pred_check
      _
    $region7: #{tpu_custom_call.1} parent=1 // pred_check_branch
      %12 = sbr.rel (0) target = $region9
    $region8: #{tpu_custom_call.1} parent=1 // pred_region
      _
    $region9: #{tpu_custom_call.1} parent=1 // pred_fallthru
      _
    // Predicated region
    $region10: #{tpu_custom_call.1} parent=1 // pred_check
      _
    $region11: #{tpu_custom_call.1} parent=1 // pred_check_branch
      %14 = sbr.rel (0) target = $region13
    $region12: #{tpu_custom_call.1} parent=1 // pred_region
      _
    $region13: #{tpu_custom_call.1} parent=1 // pred_fallthru
      _
    %v15 = vld [vmem:[%s2] sm:$0xff]
    %v16 = vld [vmem:[%s2 + $0x8] sm:$0xff]
    %v17 = vld [vmem:[%s2 + $0x10] sm:$0xff]
    %v18 = vld [vmem:[%s2 + $0x18] sm:$0xff]
    %v19 = vld [vmem:[%s2 + $0x20] sm:$0xff]
    %v20 = vld [vmem:[%s2 + $0x28] sm:$0xff]
    %v21 = vld [vmem:[%s2 + $0x30] sm:$0xff]
    %v22 = vld [vmem:[%s2 + $0x38] sm:$0xff]
    %v23 = vld [vmem:[%s2 + $0x40] sm:$0xff]
    %v24 = vld [vmem:[%s2 + $0x48] sm:$0xff]
    %v25 = vld [vmem:[%s2 + $0x50] sm:$0xff]
    %v26 = vld [vmem:[%s2 + $0x58] sm:$0xff]
    %v27 = vld [vmem:[%s2 + $0x60] sm:$0xff]
    %v28 = vld [vmem:[%s2 + $0x68] sm:$0xff]
    %v29 = vld [vmem:[%s2 + $0x70] sm:$0xff]
    %v30 = vld [vmem:[%s2 + $0x78] sm:$0xff]
    %v31 = vld [vmem:[%s2 + $0x80] sm:$0x1f]
    %v32 = vld [vmem:[%s2 + $0x88] sm:$0x7]
    %v33 = vld [vmem:[%s2 + $0x90] sm:$0x1f]
    %35 = vset.pattern.permute.xlu0 0
    %36 = vperm.xlu0 %35, %v33
    %v37 = vpop.permute.xlu0 %36
    %v39 = vld [vmem:[%s2 + $0x98] sm:$0x7]
    %41 = vset.pattern.permute.xlu0 0
    %42 = vperm.xlu0 %41, %v39
    %v43 = vpop.permute.xlu0 %42
    %v45 = vld [vmem:[%s0] sm:$0xf]
    %v46 = vld [vmem:[%s1] sm:$0x3]
    %v48 = vrot.slane %v46, 4
    %vm50 = vcmask 1043456
    %v51 = vsel %vm50, %v45, %v48
    %vm52 = vcmask 1045504
    %v53 = vsel %vm52, %v51, 1.0
    %vm54 = vcmask 1046528
    %v55 = vsel %vm54, %v53, 0.0
    %56 = vst [vmem:[#allocation2] sm:$0xff] %v55
    %v57 = vld [vmem:[#allocation2] sm:$0xff]
    %vm58 = vcmask 64512
    %v60 = vsel %vm58, %v15, 0
    %v63 = vsel %vm58, %v16, 0
    %v66 = vsel %vm58, %v17, 0
    %v69 = vsel %vm58, %v18, 0
    %v72 = vsel %vm58, %v19, 0
    %v75 = vsel %vm58, %v20, 0
    %v78 = vsel %vm58, %v21, 0
    %v81 = vsel %vm58, %v22, 0
    %83 = vmatprep.subr.mxu0 0.0
    %84 = vmatpush1.msra.mxu0 0.0
    %85 = vmatprep.subr.mxu0 0.0
    %86 = vmatpush1.msra.mxu0 0.0
    %87 = vmatprep.subr.mxu0 0.0
    %88 = vmatpush1.msra.mxu0 0.0
    %89 = vmatprep.subr.mxu0 0.0
    %90 = vmatpush1.msra.mxu0 0.0
    %91 = vmatprep.subr.mxu0 0.0
    %92 = vmatpush1.msra.mxu0 0.0
    %93 = vmatprep.subr.mxu0 0.0
    %94 = vmatpush1.msra.mxu0 0.0
    %95 = vmatprep.subr.mxu0 0.0
    %96 = vmatpush1.msra.mxu0 0.0
    %97 = vmatprep.subr.mxu0 0.0
    %98 = vmatpush1.msra.mxu0 0.0
    %99 = vmatprep.subr.mxu0 0.0
    %100 = vmatpush1.msra.mxu0 0.0
    %101 = vmatprep.subr.mxu0 0.0
    %102 = vmatpush1.msra.mxu0 0.0
    %103 = vmatprep.subr.mxu0 0.0
    %104 = vmatpush1.msra.mxu0 0.0
    %105 = vmatprep.subr.mxu0 0.0
    %106 = vmatpush1.msra.mxu0 0.0
    %107 = vmatprep.subr.mxu0 0.0
    %108 = vmatpush1.msra.mxu0 0.0
    %109 = vmatprep.subr.mxu0 0.0
    %110 = vmatpush1.msra.mxu0 0.0
    %111 = vmatprep.subr.mxu0 0.0
    %112 = vmatpush1.msra.mxu0 0.0
    %113 = vmatprep.subr.mxu0 0.0
    %114 = vmatpush1.msra.mxu0 %v57
    %115 = vmatprep.subr.mxu0 0.0
    %116 = vmatpush2.msra.mxu0 0.0
    %117 = vmatprep.subr.mxu0 0.0
    %118 = vmatpush2.msra.mxu0 0.0
    %119 = vmatprep.subr.mxu0 0.0
    %120 = vmatpush2.msra.mxu0 0.0
    %121 = vmatprep.subr.mxu0 0.0
    %122 = vmatpush2.msra.mxu0 0.0
    %123 = vmatprep.subr.mxu0 0.0
    %124 = vmatpush2.msra.mxu0 0.0
    %125 = vmatprep.subr.mxu0 0.0
    %126 = vmatpush2.msra.mxu0 0.0
    %127 = vmatprep.subr.mxu0 0.0
    %128 = vmatpush2.msra.mxu0 0.0
    %129 = vmatprep.subr.mxu0 0.0
    %130 = vmatpush2.msra.mxu0 0.0
    %131 = vmatprep.subr.mxu0 0.0
    %132 = vmatpush2.msra.mxu0 0.0
    %133 = vmatprep.subr.mxu0 0.0
    %134 = vmatpush2.msra.mxu0 0.0
    %135 = vmatprep.subr.mxu0 0.0
    %136 = vmatpush2.msra.mxu0 0.0
    %137 = vmatprep.subr.mxu0 0.0
    %138 = vmatpush2.msra.mxu0 0.0
    %139 = vmatprep.subr.mxu0 0.0
    %140 = vmatpush2.msra.mxu0 0.0
    %141 = vmatprep.subr.mxu0 0.0
    %142 = vmatpush2.msra.mxu0 0.0
    %143 = vmatprep.subr.mxu0 0.0
    %144 = vmatpush2.msra.mxu0 0.0
    %145 = vmatprep.subr.mxu0 0.0
    %146 = vmatpush2.msra.mxu0 0.0
    %147 = vmatprep.mubr.f32.mxu0 0.0
    %148 = vmatmul.mubr.f32.gmra.mxu0 %v60
    %v149 = vpop.f32.mrf.mxu0
    %v150 = vadd.f32 0.0, %v149
    %v151 = vpop.f32.mrf.mxu0
    %152 = vmatprep.mubr.f32.mxu0 0.0
    %153 = vmatmul.mubr.f32.gmra.mxu0 %v63
    %v154 = vpop.f32.mrf.mxu0
    %v155 = vadd.f32 0.0, %v154
    %v156 = vpop.f32.mrf.mxu0
    %157 = vmatprep.mubr.f32.mxu0 0.0
    %158 = vmatmul.mubr.f32.gmra.mxu0 %v66
    %v159 = vpop.f32.mrf.mxu0
    %v160 = vadd.f32 0.0, %v159
    %v161 = vpop.f32.mrf.mxu0
    %162 = vmatprep.mubr.f32.mxu0 0.0
    %163 = vmatmul.mubr.f32.gmra.mxu0 %v69
    %v164 = vpop.f32.mrf.mxu0
    %v165 = vadd.f32 0.0, %v164
    %v166 = vpop.f32.mrf.mxu0
    %167 = vmatprep.mubr.f32.mxu0 0.0
    %168 = vmatmul.mubr.f32.gmra.mxu0 %v72
    %v169 = vpop.f32.mrf.mxu0
    %v170 = vadd.f32 0.0, %v169
    %v171 = vpop.f32.mrf.mxu0
    %172 = vmatprep.mubr.f32.mxu0 0.0
    %173 = vmatmul.mubr.f32.gmra.mxu0 %v75
    %v174 = vpop.f32.mrf.mxu0
    %v175 = vadd.f32 0.0, %v174
    %v176 = vpop.f32.mrf.mxu0
    %177 = vmatprep.mubr.f32.mxu0 0.0
    %178 = vmatmul.mubr.f32.gmra.mxu0 %v78
    %v179 = vpop.f32.mrf.mxu0
    %v180 = vadd.f32 0.0, %v179
    %v181 = vpop.f32.mrf.mxu0
    %182 = vmatprep.mubr.f32.mxu0 0.0
    %183 = vmatmul.mubr.f32.gmra.mxu0 %v81
    %v184 = vpop.f32.mrf.mxu0
    %v185 = vadd.f32 0.0, %v184
    %v186 = vpop.f32.mrf.mxu0
    %187 = vdwg.mxu0
    %v188 = vtanh.pop %v150
    %v189 = vtanh.pop %v155
    %v190 = vtanh.pop %v160
    %v191 = vtanh.pop %v165
    %v192 = vtanh.pop %v170
    %v193 = vtanh.pop %v175
    %v194 = vtanh.pop %v180
    %v195 = vtanh.pop %v185
    %vm196 = vcmask 523264
    %v198 = vsel %vm196, %v31, 0
    %200 = vmatprep.subr.mxu0 0.0
    %201 = vmatpush1.msra.mxu0 0.0
    %202 = vmatprep.subr.mxu0 0.0
    %203 = vmatpush1.msra.mxu0 0.0
    %204 = vmatprep.subr.mxu0 0.0
    %205 = vmatpush1.msra.mxu0 0.0
    %206 = vmatprep.subr.mxu0 0.0
    %207 = vmatpush1.msra.mxu0 0.0
    %208 = vmatprep.subr.mxu0 0.0
    %209 = vmatpush1.msra.mxu0 0.0
    %210 = vmatprep.subr.mxu0 0.0
    %211 = vmatpush1.msra.mxu0 0.0
    %212 = vmatprep.subr.mxu0 0.0
    %213 = vmatpush1.msra.mxu0 0.0
    %214 = vmatprep.subr.mxu0 0.0
    %215 = vmatpush1.msra.mxu0 0.0
    %216 = vmatprep.subr.mxu0 0.0
    %217 = vmatpush1.msra.mxu0 %v195
    %218 = vmatprep.subr.mxu0 0.0
    %219 = vmatpush1.msra.mxu0 %v194
    %220 = vmatprep.subr.mxu0 0.0
    %221 = vmatpush1.msra.mxu0 %v193
    %222 = vmatprep.subr.mxu0 0.0
    %223 = vmatpush1.msra.mxu0 %v192
    %224 = vmatprep.subr.mxu0 0.0
    %225 = vmatpush1.msra.mxu0 %v191
    %226 = vmatprep.subr.mxu0 0.0
    %227 = vmatpush1.msra.mxu0 %v190
    %228 = vmatprep.subr.mxu0 0.0
    %229 = vmatpush1.msra.mxu0 %v189
    %230 = vmatprep.subr.mxu0 0.0
    %231 = vmatpush1.msra.mxu0 %v188
    %232 = vmatprep.subr.mxu0 0.0
    %233 = vmatpush2.msra.mxu0 0.0
    %234 = vmatprep.subr.mxu0 0.0
    %235 = vmatpush2.msra.mxu0 0.0
    %236 = vmatprep.subr.mxu0 0.0
    %237 = vmatpush2.msra.mxu0 0.0
    %238 = vmatprep.subr.mxu0 0.0
    %239 = vmatpush2.msra.mxu0 0.0
    %240 = vmatprep.subr.mxu0 0.0
    %241 = vmatpush2.msra.mxu0 0.0
    %242 = vmatprep.subr.mxu0 0.0
    %243 = vmatpush2.msra.mxu0 0.0
    %244 = vmatprep.subr.mxu0 0.0
    %245 = vmatpush2.msra.mxu0 0.0
    %246 = vmatprep.subr.mxu0 0.0
    %247 = vmatpush2.msra.mxu0 0.0
    %248 = vmatprep.subr.mxu0 0.0
    %249 = vmatpush2.msra.mxu0 0.0
    %250 = vmatprep.subr.mxu0 0.0
    %251 = vmatpush2.msra.mxu0 0.0
    %252 = vmatprep.subr.mxu0 0.0
    %253 = vmatpush2.msra.mxu0 0.0
    %254 = vmatprep.subr.mxu0 0.0
    %255 = vmatpush2.msra.mxu0 0.0
    %256 = vmatprep.subr.mxu0 0.0
    %257 = vmatpush2.msra.mxu0 0.0
    %258 = vmatprep.subr.mxu0 0.0
    %259 = vmatpush2.msra.mxu0 0.0
    %260 = vmatprep.subr.mxu0 0.0
    %261 = vmatpush2.msra.mxu0 0.0
    %262 = vmatprep.subr.mxu0 0.0
    %263 = vmatpush2.msra.mxu0 0.0
    %264 = vmatprep.mubr.f32.mxu0 0.0
    %265 = vmatmul.mubr.f32.gmra.mxu0 %v198
    %v266 = vpop.f32.mrf.mxu0
    %v267 = vadd.f32 %v37, %v266
    %v268 = vpop.f32.mrf.mxu0
    %269 = vdwg.mxu0
    %v270 = vadd.f32 %v267, 0.0
    %271 = vst [vmem:[#allocation2] sm:$0xf] %v267
    %v272 = vld [vmem:[#allocation2] sm:$0xff]
    %v274 = vsel %vm58, %v23, 0
    %v277 = vsel %vm58, %v24, 0
    %v280 = vsel %vm58, %v25, 0
    %v283 = vsel %vm58, %v26, 0
    %v286 = vsel %vm58, %v27, 0
    %v289 = vsel %vm58, %v28, 0
    %v292 = vsel %vm58, %v29, 0
    %v295 = vsel %vm58, %v30, 0
    %297 = vmatprep.subr.mxu0 0.0
    %298 = vmatpush1.msra.mxu0 0.0
    %299 = vmatprep.subr.mxu0 0.0
    %300 = vmatpush1.msra.mxu0 0.0
    %301 = vmatprep.subr.mxu0 0.0
    %302 = vmatpush1.msra.mxu0 0.0
    %303 = vmatprep.subr.mxu0 0.0
    %304 = vmatpush1.msra.mxu0 0.0
    %305 = vmatprep.subr.mxu0 0.0
    %306 = vmatpush1.msra.mxu0 0.0
    %307 = vmatprep.subr.mxu0 0.0
    %308 = vmatpush1.msra.mxu0 0.0
    %309 = vmatprep.subr.mxu0 0.0
    %310 = vmatpush1.msra.mxu0 0.0
    %311 = vmatprep.subr.mxu0 0.0
    %312 = vmatpush1.msra.mxu0 0.0
    %313 = vmatprep.subr.mxu0 0.0
    %314 = vmatpush1.msra.mxu0 0.0
    %315 = vmatprep.subr.mxu0 0.0
    %316 = vmatpush1.msra.mxu0 0.0
    %317 = vmatprep.subr.mxu0 0.0
    %318 = vmatpush1.msra.mxu0 0.0
    %319 = vmatprep.subr.mxu0 0.0
    %320 = vmatpush1.msra.mxu0 0.0
    %321 = vmatprep.subr.mxu0 0.0
    %322 = vmatpush1.msra.mxu0 0.0
    %323 = vmatprep.subr.mxu0 0.0
    %324 = vmatpush1.msra.mxu0 0.0
    %325 = vmatprep.subr.mxu0 0.0
    %326 = vmatpush1.msra.mxu0 0.0
    %327 = vmatprep.subr.mxu0 0.0
    %328 = vmatpush1.msra.mxu0 %v272
    %329 = vmatprep.subr.mxu0 0.0
    %330 = vmatpush2.msra.mxu0 0.0
    %331 = vmatprep.subr.mxu0 0.0
    %332 = vmatpush2.msra.mxu0 0.0
    %333 = vmatprep.subr.mxu0 0.0
    %334 = vmatpush2.msra.mxu0 0.0
    %335 = vmatprep.subr.mxu0 0.0
    %336 = vmatpush2.msra.mxu0 0.0
    %337 = vmatprep.subr.mxu0 0.0
    %338 = vmatpush2.msra.mxu0 0.0
    %339 = vmatprep.subr.mxu0 0.0
    %340 = vmatpush2.msra.mxu0 0.0
    %341 = vmatprep.subr.mxu0 0.0
    %342 = vmatpush2.msra.mxu0 0.0
    %343 = vmatprep.subr.mxu0 0.0
    %344 = vmatpush2.msra.mxu0 0.0
    %345 = vmatprep.subr.mxu0 0.0
    %346 = vmatpush2.msra.mxu0 0.0
    %347 = vmatprep.subr.mxu0 0.0
    %348 = vmatpush2.msra.mxu0 0.0
    %349 = vmatprep.subr.mxu0 0.0
    %350 = vmatpush2.msra.mxu0 0.0
    %351 = vmatprep.subr.mxu0 0.0
    %352 = vmatpush2.msra.mxu0 0.0
    %353 = vmatprep.subr.mxu0 0.0
    %354 = vmatpush2.msra.mxu0 0.0
    %355 = vmatprep.subr.mxu0 0.0
    %356 = vmatpush2.msra.mxu0 0.0
    %357 = vmatprep.subr.mxu0 0.0
    %358 = vmatpush2.msra.mxu0 0.0
    %359 = vmatprep.subr.mxu0 0.0
    %360 = vmatpush2.msra.mxu0 0.0
    %361 = vmatprep.mubr.f32.mxu0 0.0
    %362 = vmatmul.mubr.f32.gmra.mxu0 %v274
    %v363 = vpop.f32.mrf.mxu0
    %v364 = vadd.f32 0.0, %v363
    %v365 = vpop.f32.mrf.mxu0
    %366 = vmatprep.mubr.f32.mxu0 0.0
    %367 = vmatmul.mubr.f32.gmra.mxu0 %v277
    %v368 = vpop.f32.mrf.mxu0
    %v369 = vadd.f32 0.0, %v368
    %v370 = vpop.f32.mrf.mxu0
    %371 = vmatprep.mubr.f32.mxu0 0.0
    %372 = vmatmul.mubr.f32.gmra.mxu0 %v280
    %v373 = vpop.f32.mrf.mxu0
    %v374 = vadd.f32 0.0, %v373
    %v375 = vpop.f32.mrf.mxu0
    %376 = vmatprep.mubr.f32.mxu0 0.0
    %377 = vmatmul.mubr.f32.gmra.mxu0 %v283
    %v378 = vpop.f32.mrf.mxu0
    %v379 = vadd.f32 0.0, %v378
    %v380 = vpop.f32.mrf.mxu0
    %381 = vmatprep.mubr.f32.mxu0 0.0
    %382 = vmatmul.mubr.f32.gmra.mxu0 %v286
    %v383 = vpop.f32.mrf.mxu0
    %v384 = vadd.f32 0.0, %v383
    %v385 = vpop.f32.mrf.mxu0
    %386 = vmatprep.mubr.f32.mxu0 0.0
    %387 = vmatmul.mubr.f32.gmra.mxu0 %v289
    %v388 = vpop.f32.mrf.mxu0
    %v389 = vadd.f32 0.0, %v388
    %v390 = vpop.f32.mrf.mxu0
    %391 = vmatprep.mubr.f32.mxu0 0.0
    %392 = vmatmul.mubr.f32.gmra.mxu0 %v292
    %v393 = vpop.f32.mrf.mxu0
    %v394 = vadd.f32 0.0, %v393
    %v395 = vpop.f32.mrf.mxu0
    %396 = vmatprep.mubr.f32.mxu0 0.0
    %397 = vmatmul.mubr.f32.gmra.mxu0 %v295
    %v398 = vpop.f32.mrf.mxu0
    %v399 = vadd.f32 0.0, %v398
    %v400 = vpop.f32.mrf.mxu0
    %401 = vdwg.mxu0
    %v402 = vtanh.pop %v364
    %v403 = vtanh.pop %v369
    %v404 = vtanh.pop %v374
    %v405 = vtanh.pop %v379
    %v406 = vtanh.pop %v384
    %v407 = vtanh.pop %v389
    %v408 = vtanh.pop %v394
    %v409 = vtanh.pop %v399
    %v411 = vsel %vm196, %v32, 0
    %413 = vmatprep.subr.mxu0 0.0
    %414 = vmatpush1.msra.mxu0 0.0
    %415 = vmatprep.subr.mxu0 0.0
    %416 = vmatpush1.msra.mxu0 0.0
    %417 = vmatprep.subr.mxu0 0.0
    %418 = vmatpush1.msra.mxu0 0.0
    %419 = vmatprep.subr.mxu0 0.0
    %420 = vmatpush1.msra.mxu0 0.0
    %421 = vmatprep.subr.mxu0 0.0
    %422 = vmatpush1.msra.mxu0 0.0
    %423 = vmatprep.subr.mxu0 0.0
    %424 = vmatpush1.msra.mxu0 0.0
    %425 = vmatprep.subr.mxu0 0.0
    %426 = vmatpush1.msra.mxu0 0.0
    %427 = vmatprep.subr.mxu0 0.0
    %428 = vmatpush1.msra.mxu0 0.0
    %429 = vmatprep.subr.mxu0 0.0
    %430 = vmatpush1.msra.mxu0 %v409
    %431 = vmatprep.subr.mxu0 0.0
    %432 = vmatpush1.msra.mxu0 %v408
    %433 = vmatprep.subr.mxu0 0.0
    %434 = vmatpush1.msra.mxu0 %v407
    %435 = vmatprep.subr.mxu0 0.0
    %436 = vmatpush1.msra.mxu0 %v406
    %437 = vmatprep.subr.mxu0 0.0
    %438 = vmatpush1.msra.mxu0 %v405
    %439 = vmatprep.subr.mxu0 0.0
    %440 = vmatpush1.msra.mxu0 %v404
    %441 = vmatprep.subr.mxu0 0.0
    %442 = vmatpush1.msra.mxu0 %v403
    %443 = vmatprep.subr.mxu0 0.0
    %444 = vmatpush1.msra.mxu0 %v402
    %445 = vmatprep.subr.mxu0 0.0
    %446 = vmatpush2.msra.mxu0 0.0
    %447 = vmatprep.subr.mxu0 0.0
    %448 = vmatpush2.msra.mxu0 0.0
    %449 = vmatprep.subr.mxu0 0.0
    %450 = vmatpush2.msra.mxu0 0.0
    %451 = vmatprep.subr.mxu0 0.0
    %452 = vmatpush2.msra.mxu0 0.0
    %453 = vmatprep.subr.mxu0 0.0
    %454 = vmatpush2.msra.mxu0 0.0
    %455 = vmatprep.subr.mxu0 0.0
    %456 = vmatpush2.msra.mxu0 0.0
    %457 = vmatprep.subr.mxu0 0.0
    %458 = vmatpush2.msra.mxu0 0.0
    %459 = vmatprep.subr.mxu0 0.0
    %460 = vmatpush2.msra.mxu0 0.0
    %461 = vmatprep.subr.mxu0 0.0
    %462 = vmatpush2.msra.mxu0 0.0
    %463 = vmatprep.subr.mxu0 0.0
    %464 = vmatpush2.msra.mxu0 0.0
    %465 = vmatprep.subr.mxu0 0.0
    %466 = vmatpush2.msra.mxu0 0.0
    %467 = vmatprep.subr.mxu0 0.0
    %468 = vmatpush2.msra.mxu0 0.0
    %469 = vmatprep.subr.mxu0 0.0
    %470 = vmatpush2.msra.mxu0 0.0
    %471 = vmatprep.subr.mxu0 0.0
    %472 = vmatpush2.msra.mxu0 0.0
    %473 = vmatprep.subr.mxu0 0.0
    %474 = vmatpush2.msra.mxu0 0.0
    %475 = vmatprep.subr.mxu0 0.0
    %476 = vmatpush2.msra.mxu0 0.0
    %477 = vmatprep.mubr.f32.mxu0 0.0
    %478 = vmatmul.mubr.f32.gmra.mxu0 %v411
    %v479 = vpop.f32.mrf.mxu0
    %v480 = vadd.f32 %v43, %v479
    %v481 = vpop.f32.mrf.mxu0
    %482 = vdwg.mxu0
    %v483 = vtanh.pop %v480
    %484 = vst [vmem:[#allocation2 + $0x4] sm:$0x3] %v483
    %v485 = vld [vmem:[#allocation2] sm:$0xff]
    %486 = vmatprep.subr.mxu0 0.0
    %487 = vmatpush1.msra.mxu0 0.0
    %488 = vmatprep.subr.mxu0 0.0
    %489 = vmatpush1.msra.mxu0 0.0
    %490 = vmatprep.subr.mxu0 0.0
    %491 = vmatpush1.msra.mxu0 0.0
    %492 = vmatprep.subr.mxu0 0.0
    %493 = vmatpush1.msra.mxu0 0.0
    %494 = vmatprep.subr.mxu0 0.0
    %495 = vmatpush1.msra.mxu0 0.0
    %496 = vmatprep.subr.mxu0 0.0
    %497 = vmatpush1.msra.mxu0 0.0
    %498 = vmatprep.subr.mxu0 0.0
    %499 = vmatpush1.msra.mxu0 0.0
    %500 = vmatprep.subr.mxu0 0.0
    %501 = vmatpush1.msra.mxu0 0.0
    %502 = vmatprep.subr.mxu0 0.0
    %503 = vmatpush1.msra.mxu0 0.0
    %504 = vmatprep.subr.mxu0 0.0
    %505 = vmatpush1.msra.mxu0 0.0
    %506 = vmatprep.subr.mxu0 0.0
    %507 = vmatpush1.msra.mxu0 0.0
    %508 = vmatprep.subr.mxu0 0.0
    %509 = vmatpush1.msra.mxu0 0.0
    %510 = vmatprep.subr.mxu0 0.0
    %511 = vmatpush1.msra.mxu0 0.0
    %512 = vmatprep.subr.mxu0 0.0
    %513 = vmatpush1.msra.mxu0 0.0
    %514 = vmatprep.subr.mxu0 0.0
    %515 = vmatpush1.msra.mxu0 0.0
    %516 = vmatprep.subr.mxu0 0.0
    %517 = vmatpush1.msra.mxu0 %v485
    %518 = vmatprep.subr.mxu0 0.0
    %519 = vmatpush2.msra.mxu0 0.0
    %520 = vmatprep.subr.mxu0 0.0
    %521 = vmatpush2.msra.mxu0 0.0
    %522 = vmatprep.subr.mxu0 0.0
    %523 = vmatpush2.msra.mxu0 0.0
    %524 = vmatprep.subr.mxu0 0.0
    %525 = vmatpush2.msra.mxu0 0.0
    %526 = vmatprep.subr.mxu0 0.0
    %527 = vmatpush2.msra.mxu0 0.0
    %528 = vmatprep.subr.mxu0 0.0
    %529 = vmatpush2.msra.mxu0 0.0
    %530 = vmatprep.subr.mxu0 0.0
    %531 = vmatpush2.msra.mxu0 0.0
    %532 = vmatprep.subr.mxu0 0.0
    %533 = vmatpush2.msra.mxu0 0.0
    %534 = vmatprep.subr.mxu0 0.0
    %535 = vmatpush2.msra.mxu0 0.0
    %536 = vmatprep.subr.mxu0 0.0
    %537 = vmatpush2.msra.mxu0 0.0
    %538 = vmatprep.subr.mxu0 0.0
    %539 = vmatpush2.msra.mxu0 0.0
    %540 = vmatprep.subr.mxu0 0.0
    %541 = vmatpush2.msra.mxu0 0.0
    %542 = vmatprep.subr.mxu0 0.0
    %543 = vmatpush2.msra.mxu0 0.0
    %544 = vmatprep.subr.mxu0 0.0
    %545 = vmatpush2.msra.mxu0 0.0
    %546 = vmatprep.subr.mxu0 0.0
    %547 = vmatpush2.msra.mxu0 0.0
    %548 = vmatprep.subr.mxu0 0.0
    %549 = vmatpush2.msra.mxu0 0.0
    %550 = vmatprep.mubr.f32.mxu0 0.0
    %551 = vmatmul.mubr.f32.gmra.mxu0 %v60
    %v552 = vpop.f32.mrf.mxu0
    %v553 = vadd.f32 0.0, %v552
    %v554 = vpop.f32.mrf.mxu0
    %555 = vmatprep.mubr.f32.mxu0 0.0
    %556 = vmatmul.mubr.f32.gmra.mxu0 %v63
    %v557 = vpop.f32.mrf.mxu0
    %v558 = vadd.f32 0.0, %v557
    %v559 = vpop.f32.mrf.mxu0
    %560 = vmatprep.mubr.f32.mxu0 0.0
    %561 = vmatmul.mubr.f32.gmra.mxu0 %v66
    %v562 = vpop.f32.mrf.mxu0
    %v563 = vadd.f32 0.0, %v562
    %v564 = vpop.f32.mrf.mxu0
    %565 = vmatprep.mubr.f32.mxu0 0.0
    %566 = vmatmul.mubr.f32.gmra.mxu0 %v69
    %v567 = vpop.f32.mrf.mxu0
    %v568 = vadd.f32 0.0, %v567
    %v569 = vpop.f32.mrf.mxu0
    %570 = vmatprep.mubr.f32.mxu0 0.0
    %571 = vmatmul.mubr.f32.gmra.mxu0 %v72
    %v572 = vpop.f32.mrf.mxu0
    %v573 = vadd.f32 0.0, %v572
    %v574 = vpop.f32.mrf.mxu0
    %575 = vmatprep.mubr.f32.mxu0 0.0
    %576 = vmatmul.mubr.f32.gmra.mxu0 %v75
    %v577 = vpop.f32.mrf.mxu0
    %v578 = vadd.f32 0.0, %v577
    %v579 = vpop.f32.mrf.mxu0
    %580 = vmatprep.mubr.f32.mxu0 0.0
    %581 = vmatmul.mubr.f32.gmra.mxu0 %v78
    %v582 = vpop.f32.mrf.mxu0
    %v583 = vadd.f32 0.0, %v582
    %v584 = vpop.f32.mrf.mxu0
    %585 = vmatprep.mubr.f32.mxu0 0.0
    %586 = vmatmul.mubr.f32.gmra.mxu0 %v81
    %v587 = vpop.f32.mrf.mxu0
    %v588 = vadd.f32 0.0, %v587
    %v589 = vpop.f32.mrf.mxu0
    %590 = vdwg.mxu0
    %v591 = vtanh.pop %v553
    %v592 = vtanh.pop %v558
    %v593 = vtanh.pop %v563
    %v594 = vtanh.pop %v568
    %v595 = vtanh.pop %v573
    %v596 = vtanh.pop %v578
    %v597 = vtanh.pop %v583
    %v598 = vtanh.pop %v588
    %599 = vmatprep.subr.mxu0 0.0
    %600 = vmatpush1.msra.mxu0 0.0
    %601 = vmatprep.subr.mxu0 0.0
    %602 = vmatpush1.msra.mxu0 0.0
    %603 = vmatprep.subr.mxu0 0.0
    %604 = vmatpush1.msra.mxu0 0.0
    %605 = vmatprep.subr.mxu0 0.0
    %606 = vmatpush1.msra.mxu0 0.0
    %607 = vmatprep.subr.mxu0 0.0
    %608 = vmatpush1.msra.mxu0 0.0
    %609 = vmatprep.subr.mxu0 0.0
    %610 = vmatpush1.msra.mxu0 0.0
    %611 = vmatprep.subr.mxu0 0.0
    %612 = vmatpush1.msra.mxu0 0.0
    %613 = vmatprep.subr.mxu0 0.0
    %614 = vmatpush1.msra.mxu0 0.0
    %615 = vmatprep.subr.mxu0 0.0
    %616 = vmatpush1.msra.mxu0 %v598
    %617 = vmatprep.subr.mxu0 0.0
    %618 = vmatpush1.msra.mxu0 %v597
    %619 = vmatprep.subr.mxu0 0.0
    %620 = vmatpush1.msra.mxu0 %v596
    %621 = vmatprep.subr.mxu0 0.0
    %622 = vmatpush1.msra.mxu0 %v595
    %623 = vmatprep.subr.mxu0 0.0
    %624 = vmatpush1.msra.mxu0 %v594
    %625 = vmatprep.subr.mxu0 0.0
    %626 = vmatpush1.msra.mxu0 %v593
    %627 = vmatprep.subr.mxu0 0.0
    %628 = vmatpush1.msra.mxu0 %v592
    %629 = vmatprep.subr.mxu0 0.0
    %630 = vmatpush1.msra.mxu0 %v591
    %631 = vmatprep.subr.mxu0 0.0
    %632 = vmatpush2.msra.mxu0 0.0
    %633 = vmatprep.subr.mxu0 0.0
    %634 = vmatpush2.msra.mxu0 0.0
    %635 = vmatprep.subr.mxu0 0.0
    %636 = vmatpush2.msra.mxu0 0.0
    %637 = vmatprep.subr.mxu0 0.0
    %638 = vmatpush2.msra.mxu0 0.0
    %639 = vmatprep.subr.mxu0 0.0
    %640 = vmatpush2.msra.mxu0 0.0
    %641 = vmatprep.subr.mxu0 0.0
    %642 = vmatpush2.msra.mxu0 0.0
    %643 = vmatprep.subr.mxu0 0.0
    %644 = vmatpush2.msra.mxu0 0.0
    %645 = vmatprep.subr.mxu0 0.0
    %646 = vmatpush2.msra.mxu0 0.0
    %647 = vmatprep.subr.mxu0 0.0
    %648 = vmatpush2.msra.mxu0 0.0
    %649 = vmatprep.subr.mxu0 0.0
    %650 = vmatpush2.msra.mxu0 0.0
    %651 = vmatprep.subr.mxu0 0.0
    %652 = vmatpush2.msra.mxu0 0.0
    %653 = vmatprep.subr.mxu0 0.0
    %654 = vmatpush2.msra.mxu0 0.0
    %655 = vmatprep.subr.mxu0 0.0
    %656 = vmatpush2.msra.mxu0 0.0
    %657 = vmatprep.subr.mxu0 0.0
    %658 = vmatpush2.msra.mxu0 0.0
    %659 = vmatprep.subr.mxu0 0.0
    %660 = vmatpush2.msra.mxu0 0.0
    %661 = vmatprep.subr.mxu0 0.0
    %662 = vmatpush2.msra.mxu0 0.0
    %663 = vmatprep.mubr.f32.mxu0 0.0
    %664 = vmatmul.mubr.f32.gmra.mxu0 %v198
    %v665 = vpop.f32.mrf.mxu0
    %v666 = vadd.f32 %v37, %v665
    %v667 = vpop.f32.mrf.mxu0
    %668 = vdwg.mxu0
    %v669 = vadd.f32 %v270, %v666
    %670 = vst [vmem:[#allocation2] sm:$0xf] %v666
    %v671 = vld [vmem:[#allocation2] sm:$0xff]
    %672 = vmatprep.subr.mxu0 0.0
    %673 = vmatpush1.msra.mxu0 0.0
    %674 = vmatprep.subr.mxu0 0.0
    %675 = vmatpush1.msra.mxu0 0.0
    %676 = vmatprep.subr.mxu0 0.0
    %677 = vmatpush1.msra.mxu0 0.0
    %678 = vmatprep.subr.mxu0 0.0
    %679 = vmatpush1.msra.mxu0 0.0
    %680 = vmatprep.subr.mxu0 0.0
    %681 = vmatpush1.msra.mxu0 0.0
    %682 = vmatprep.subr.mxu0 0.0
    %683 = vmatpush1.msra.mxu0 0.0
    %684 = vmatprep.subr.mxu0 0.0
    %685 = vmatpush1.msra.mxu0 0.0
    %686 = vmatprep.subr.mxu0 0.0
    %687 = vmatpush1.msra.mxu0 0.0
    %688 = vmatprep.subr.mxu0 0.0
    %689 = vmatpush1.msra.mxu0 0.0
    %690 = vmatprep.subr.mxu0 0.0
    %691 = vmatpush1.msra.mxu0 0.0
    %692 = vmatprep.subr.mxu0 0.0
    %693 = vmatpush1.msra.mxu0 0.0
    %694 = vmatprep.subr.mxu0 0.0
    %695 = vmatpush1.msra.mxu0 0.0
    %696 = vmatprep.subr.mxu0 0.0
    %697 = vmatpush1.msra.mxu0 0.0
    %698 = vmatprep.subr.mxu0 0.0
    %699 = vmatpush1.msra.mxu0 0.0
    %700 = vmatprep.subr.mxu0 0.0
    %701 = vmatpush1.msra.mxu0 0.0
    %702 = vmatprep.subr.mxu0 0.0
    %703 = vmatpush1.msra.mxu0 %v671
    %704 = vmatprep.subr.mxu0 0.0
    %705 = vmatpush2.msra.mxu0 0.0
    %706 = vmatprep.subr.mxu0 0.0
    %707 = vmatpush2.msra.mxu0 0.0
    %708 = vmatprep.subr.mxu0 0.0
    %709 = vmatpush2.msra.mxu0 0.0
    %710 = vmatprep.subr.mxu0 0.0
    %711 = vmatpush2.msra.mxu0 0.0
    %712 = vmatprep.subr.mxu0 0.0
    %713 = vmatpush2.msra.mxu0 0.0
    %714 = vmatprep.subr.mxu0 0.0
    %715 = vmatpush2.msra.mxu0 0.0
    %716 = vmatprep.subr.mxu0 0.0
    %717 = vmatpush2.msra.mxu0 0.0
    %718 = vmatprep.subr.mxu0 0.0
    %719 = vmatpush2.msra.mxu0 0.0
    %720 = vmatprep.subr.mxu0 0.0
    %721 = vmatpush2.msra.mxu0 0.0
    %722 = vmatprep.subr.mxu0 0.0
    %723 = vmatpush2.msra.mxu0 0.0
    %724 = vmatprep.subr.mxu0 0.0
    %725 = vmatpush2.msra.mxu0 0.0
    %726 = vmatprep.subr.mxu0 0.0
    %727 = vmatpush2.msra.mxu0 0.0
    %728 = vmatprep.subr.mxu0 0.0
    %729 = vmatpush2.msra.mxu0 0.0
    %730 = vmatprep.subr.mxu0 0.0
    %731 = vmatpush2.msra.mxu0 0.0
    %732 = vmatprep.subr.mxu0 0.0
    %733 = vmatpush2.msra.mxu0 0.0
    %734 = vmatprep.subr.mxu0 0.0
    %735 = vmatpush2.msra.mxu0 0.0
    %736 = vmatprep.mubr.f32.mxu0 0.0
    %737 = vmatmul.mubr.f32.gmra.mxu0 %v274
    %v738 = vpop.f32.mrf.mxu0
    %v739 = vadd.f32 0.0, %v738
    %v740 = vpop.f32.mrf.mxu0
    %741 = vmatprep.mubr.f32.mxu0 0.0
    %742 = vmatmul.mubr.f32.gmra.mxu0 %v277
    %v743 = vpop.f32.mrf.mxu0
    %v744 = vadd.f32 0.0, %v743
    %v745 = vpop.f32.mrf.mxu0
    %746 = vmatprep.mubr.f32.mxu0 0.0
    %747 = vmatmul.mubr.f32.gmra.mxu0 %v280
    %v748 = vpop.f32.mrf.mxu0
    %v749 = vadd.f32 0.0, %v748
    %v750 = vpop.f32.mrf.mxu0
    %751 = vmatprep.mubr.f32.mxu0 0.0
    %752 = vmatmul.mubr.f32.gmra.mxu0 %v283
    %v753 = vpop.f32.mrf.mxu0
    %v754 = vadd.f32 0.0, %v753
    %v755 = vpop.f32.mrf.mxu0
    %756 = vmatprep.mubr.f32.mxu0 0.0
    %757 = vmatmul.mubr.f32.gmra.mxu0 %v286
    %v758 = vpop.f32.mrf.mxu0
    %v759 = vadd.f32 0.0, %v758
    %v760 = vpop.f32.mrf.mxu0
    %761 = vmatprep.mubr.f32.mxu0 0.0
    %762 = vmatmul.mubr.f32.gmra.mxu0 %v289
    %v763 = vpop.f32.mrf.mxu0
    %v764 = vadd.f32 0.0, %v763
    %v765 = vpop.f32.mrf.mxu0
    %766 = vmatprep.mubr.f32.mxu0 0.0
    %767 = vmatmul.mubr.f32.gmra.mxu0 %v292
    %v768 = vpop.f32.mrf.mxu0
    %v769 = vadd.f32 0.0, %v768
    %v770 = vpop.f32.mrf.mxu0
    %771 = vmatprep.mubr.f32.mxu0 0.0
    %772 = vmatmul.mubr.f32.gmra.mxu0 %v295
    %v773 = vpop.f32.mrf.mxu0
    %v774 = vadd.f32 0.0, %v773
    %v775 = vpop.f32.mrf.mxu0
    %776 = vdwg.mxu0
    %v777 = vtanh.pop %v739
    %v778 = vtanh.pop %v744
    %v779 = vtanh.pop %v749
    %v780 = vtanh.pop %v754
    %v781 = vtanh.pop %v759
    %v782 = vtanh.pop %v764
    %v783 = vtanh.pop %v769
    %v784 = vtanh.pop %v774
    %785 = vmatprep.subr.mxu0 0.0
    %786 = vmatpush1.msra.mxu0 0.0
    %787 = vmatprep.subr.mxu0 0.0
    %788 = vmatpush1.msra.mxu0 0.0
    %789 = vmatprep.subr.mxu0 0.0
    %790 = vmatpush1.msra.mxu0 0.0
    %791 = vmatprep.subr.mxu0 0.0
    %792 = vmatpush1.msra.mxu0 0.0
    %793 = vmatprep.subr.mxu0 0.0
    %794 = vmatpush1.msra.mxu0 0.0
    %795 = vmatprep.subr.mxu0 0.0
    %796 = vmatpush1.msra.mxu0 0.0
    %797 = vmatprep.subr.mxu0 0.0
    %798 = vmatpush1.msra.mxu0 0.0
    %799 = vmatprep.subr.mxu0 0.0
    %800 = vmatpush1.msra.mxu0 0.0
    %801 = vmatprep.subr.mxu0 0.0
    %802 = vmatpush1.msra.mxu0 %v784
    %803 = vmatprep.subr.mxu0 0.0
    %804 = vmatpush1.msra.mxu0 %v783
    %805 = vmatprep.subr.mxu0 0.0
    %806 = vmatpush1.msra.mxu0 %v782
    %807 = vmatprep.subr.mxu0 0.0
    %808 = vmatpush1.msra.mxu0 %v781
    %809 = vmatprep.subr.mxu0 0.0
    %810 = vmatpush1.msra.mxu0 %v780
    %811 = vmatprep.subr.mxu0 0.0
    %812 = vmatpush1.msra.mxu0 %v779
    %813 = vmatprep.subr.mxu0 0.0
    %814 = vmatpush1.msra.mxu0 %v778
    %815 = vmatprep.subr.mxu0 0.0
    %816 = vmatpush1.msra.mxu0 %v777
    %817 = vmatprep.subr.mxu0 0.0
    %818 = vmatpush2.msra.mxu0 0.0
    %819 = vmatprep.subr.mxu0 0.0
    %820 = vmatpush2.msra.mxu0 0.0
    %821 = vmatprep.subr.mxu0 0.0
    %822 = vmatpush2.msra.mxu0 0.0
    %823 = vmatprep.subr.mxu0 0.0
    %824 = vmatpush2.msra.mxu0 0.0
    %825 = vmatprep.subr.mxu0 0.0
    %826 = vmatpush2.msra.mxu0 0.0
    %827 = vmatprep.subr.mxu0 0.0
    %828 = vmatpush2.msra.mxu0 0.0
    %829 = vmatprep.subr.mxu0 0.0
    %830 = vmatpush2.msra.mxu0 0.0
    %831 = vmatprep.subr.mxu0 0.0
    %832 = vmatpush2.msra.mxu0 0.0
    %833 = vmatprep.subr.mxu0 0.0
    %834 = vmatpush2.msra.mxu0 0.0
    %835 = vmatprep.subr.mxu0 0.0
    %836 = vmatpush2.msra.mxu0 0.0
    %837 = vmatprep.subr.mxu0 0.0
    %838 = vmatpush2.msra.mxu0 0.0
    %839 = vmatprep.subr.mxu0 0.0
    %840 = vmatpush2.msra.mxu0 0.0
    %841 = vmatprep.subr.mxu0 0.0
    %842 = vmatpush2.msra.mxu0 0.0
    %843 = vmatprep.subr.mxu0 0.0
    %844 = vmatpush2.msra.mxu0 0.0
    %845 = vmatprep.subr.mxu0 0.0
    %846 = vmatpush2.msra.mxu0 0.0
    %847 = vmatprep.subr.mxu0 0.0
    %848 = vmatpush2.msra.mxu0 0.0
    %849 = vmatprep.mubr.f32.mxu0 0.0
    %850 = vmatmul.mubr.f32.gmra.mxu0 %v411
    %v851 = vpop.f32.mrf.mxu0
    %v852 = vadd.f32 %v43, %v851
    %v853 = vpop.f32.mrf.mxu0
    %854 = vdwg.mxu0
    %v855 = vtanh.pop %v852
    %856 = vst [vmem:[#allocation2 + $0x4] sm:$0x3] %v855
    %v857 = vld [vmem:[#allocation2] sm:$0xff]
    %858 = vmatprep.subr.mxu0 0.0
    %859 = vmatpush1.msra.mxu0 0.0
    %860 = vmatprep.subr.mxu0 0.0
    %861 = vmatpush1.msra.mxu0 0.0
    %862 = vmatprep.subr.mxu0 0.0
    %863 = vmatpush1.msra.mxu0 0.0
    %864 = vmatprep.subr.mxu0 0.0
    %865 = vmatpush1.msra.mxu0 0.0
    %866 = vmatprep.subr.mxu0 0.0
    %867 = vmatpush1.msra.mxu0 0.0
    %868 = vmatprep.subr.mxu0 0.0
    %869 = vmatpush1.msra.mxu0 0.0
    %870 = vmatprep.subr.mxu0 0.0
    %871 = vmatpush1.msra.mxu0 0.0
    %872 = vmatprep.subr.mxu0 0.0
    %873 = vmatpush1.msra.mxu0 0.0
    %874 = vmatprep.subr.mxu0 0.0
    %875 = vmatpush1.msra.mxu0 0.0
    %876 = vmatprep.subr.mxu0 0.0
    %877 = vmatpush1.msra.mxu0 0.0
    %878 = vmatprep.subr.mxu0 0.0
    %879 = vmatpush1.msra.mxu0 0.0
    %880 = vmatprep.subr.mxu0 0.0
    %881 = vmatpush1.msra.mxu0 0.0
    %882 = vmatprep.subr.mxu0 0.0
    %883 = vmatpush1.msra.mxu0 0.0
    %884 = vmatprep.subr.mxu0 0.0
    %885 = vmatpush1.msra.mxu0 0.0
    %886 = vmatprep.subr.mxu0 0.0
    %887 = vmatpush1.msra.mxu0 0.0
    %888 = vmatprep.subr.mxu0 0.0
    %889 = vmatpush1.msra.mxu0 %v857
    %890 = vmatprep.subr.mxu0 0.0
    %891 = vmatpush2.msra.mxu0 0.0
    %892 = vmatprep.subr.mxu0 0.0
    %893 = vmatpush2.msra.mxu0 0.0
    %894 = vmatprep.subr.mxu0 0.0
    %895 = vmatpush2.msra.mxu0 0.0
    %896 = vmatprep.subr.mxu0 0.0
    %897 = vmatpush2.msra.mxu0 0.0
    %898 = vmatprep.subr.mxu0 0.0
    %899 = vmatpush2.msra.mxu0 0.0
    %900 = vmatprep.subr.mxu0 0.0
    %901 = vmatpush2.msra.mxu0 0.0
    %902 = vmatprep.subr.mxu0 0.0
    %903 = vmatpush2.msra.mxu0 0.0
    %904 = vmatprep.subr.mxu0 0.0
    %905 = vmatpush2.msra.mxu0 0.0
    %906 = vmatprep.subr.mxu0 0.0
    %907 = vmatpush2.msra.mxu0 0.0
    %908 = vmatprep.subr.mxu0 0.0
    %909 = vmatpush2.msra.mxu0 0.0
    %910 = vmatprep.subr.mxu0 0.0
    %911 = vmatpush2.msra.mxu0 0.0
    %912 = vmatprep.subr.mxu0 0.0
    %913 = vmatpush2.msra.mxu0 0.0
    %914 = vmatprep.subr.mxu0 0.0
    %915 = vmatpush2.msra.mxu0 0.0
    %916 = vmatprep.subr.mxu0 0.0
    %917 = vmatpush2.msra.mxu0 0.0
    %918 = vmatprep.subr.mxu0 0.0
    %919 = vmatpush2.msra.mxu0 0.0
    %920 = vmatprep.subr.mxu0 0.0
    %921 = vmatpush2.msra.mxu0 0.0
    %922 = vmatprep.mubr.f32.mxu0 0.0
    %923 = vmatmul.mubr.f32.gmra.mxu0 %v60
    %v924 = vpop.f32.mrf.mxu0
    %v925 = vadd.f32 0.0, %v924
    %v926 = vpop.f32.mrf.mxu0
    %927 = vmatprep.mubr.f32.mxu0 0.0
    %928 = vmatmul.mubr.f32.gmra.mxu0 %v63
    %v929 = vpop.f32.mrf.mxu0
    %v930 = vadd.f32 0.0, %v929
    %v931 = vpop.f32.mrf.mxu0
    %932 = vmatprep.mubr.f32.mxu0 0.0
    %933 = vmatmul.mubr.f32.gmra.mxu0 %v66
    %v934 = vpop.f32.mrf.mxu0
    %v935 = vadd.f32 0.0, %v934
    %v936 = vpop.f32.mrf.mxu0
    %937 = vmatprep.mubr.f32.mxu0 0.0
    %938 = vmatmul.mubr.f32.gmra.mxu0 %v69
    %v939 = vpop.f32.mrf.mxu0
    %v940 = vadd.f32 0.0, %v939
    %v941 = vpop.f32.mrf.mxu0
    %942 = vmatprep.mubr.f32.mxu0 0.0
    %943 = vmatmul.mubr.f32.gmra.mxu0 %v72
    %v944 = vpop.f32.mrf.mxu0
    %v945 = vadd.f32 0.0, %v944
    %v946 = vpop.f32.mrf.mxu0
    %947 = vmatprep.mubr.f32.mxu0 0.0
    %948 = vmatmul.mubr.f32.gmra.mxu0 %v75
    %v949 = vpop.f32.mrf.mxu0
    %v950 = vadd.f32 0.0, %v949
    %v951 = vpop.f32.mrf.mxu0
    %952 = vmatprep.mubr.f32.mxu0 0.0
    %953 = vmatmul.mubr.f32.gmra.mxu0 %v78
    %v954 = vpop.f32.mrf.mxu0
    %v955 = vadd.f32 0.0, %v954
    %v956 = vpop.f32.mrf.mxu0
    %957 = vmatprep.mubr.f32.mxu0 0.0
    %958 = vmatmul.mubr.f32.gmra.mxu0 %v81
    %v959 = vpop.f32.mrf.mxu0
    %v960 = vadd.f32 0.0, %v959
    %v961 = vpop.f32.mrf.mxu0
    %962 = vdwg.mxu0
    %v963 = vtanh.pop %v925
    %v964 = vtanh.pop %v930
    %v965 = vtanh.pop %v935
    %v966 = vtanh.pop %v940
    %v967 = vtanh.pop %v945
    %v968 = vtanh.pop %v950
    %v969 = vtanh.pop %v955
    %v970 = vtanh.pop %v960
    %971 = vmatprep.subr.mxu0 0.0
    %972 = vmatpush1.msra.mxu0 0.0
    %973 = vmatprep.subr.mxu0 0.0
    %974 = vmatpush1.msra.mxu0 0.0
    %975 = vmatprep.subr.mxu0 0.0
    %976 = vmatpush1.msra.mxu0 0.0
    %977 = vmatprep.subr.mxu0 0.0
    %978 = vmatpush1.msra.mxu0 0.0
    %979 = vmatprep.subr.mxu0 0.0
    %980 = vmatpush1.msra.mxu0 0.0
    %981 = vmatprep.subr.mxu0 0.0
    %982 = vmatpush1.msra.mxu0 0.0
    %983 = vmatprep.subr.mxu0 0.0
    %984 = vmatpush1.msra.mxu0 0.0
    %985 = vmatprep.subr.mxu0 0.0
    %986 = vmatpush1.msra.mxu0 0.0
    %987 = vmatprep.subr.mxu0 0.0
    %988 = vmatpush1.msra.mxu0 %v970
    %989 = vmatprep.subr.mxu0 0.0
    %990 = vmatpush1.msra.mxu0 %v969
    %991 = vmatprep.subr.mxu0 0.0
    %992 = vmatpush1.msra.mxu0 %v968
    %993 = vmatprep.subr.mxu0 0.0
    %994 = vmatpush1.msra.mxu0 %v967
    %995 = vmatprep.subr.mxu0 0.0
    %996 = vmatpush1.msra.mxu0 %v966
    %997 = vmatprep.subr.mxu0 0.0
    %998 = vmatpush1.msra.mxu0 %v965
    %999 = vmatprep.subr.mxu0 0.0
    %1000 = vmatpush1.msra.mxu0 %v964
    %1001 = vmatprep.subr.mxu0 0.0
    %1002 = vmatpush1.msra.mxu0 %v963
    %1003 = vmatprep.subr.mxu0 0.0
    %1004 = vmatpush2.msra.mxu0 0.0
    %1005 = vmatprep.subr.mxu0 0.0
    %1006 = vmatpush2.msra.mxu0 0.0
    %1007 = vmatprep.subr.mxu0 0.0
    %1008 = vmatpush2.msra.mxu0 0.0
    %1009 = vmatprep.subr.mxu0 0.0
    %1010 = vmatpush2.msra.mxu0 0.0
    %1011 = vmatprep.subr.mxu0 0.0
    %1012 = vmatpush2.msra.mxu0 0.0
    %1013 = vmatprep.subr.mxu0 0.0
    %1014 = vmatpush2.msra.mxu0 0.0
    %1015 = vmatprep.subr.mxu0 0.0
    %1016 = vmatpush2.msra.mxu0 0.0
    %1017 = vmatprep.subr.mxu0 0.0
    %1018 = vmatpush2.msra.mxu0 0.0
    %1019 = vmatprep.subr.mxu0 0.0
    %1020 = vmatpush2.msra.mxu0 0.0
    %1021 = vmatprep.subr.mxu0 0.0
    %1022 = vmatpush2.msra.mxu0 0.0
    %1023 = vmatprep.subr.mxu0 0.0
    %1024 = vmatpush2.msra.mxu0 0.0
    %1025 = vmatprep.subr.mxu0 0.0
    %1026 = vmatpush2.msra.mxu0 0.0
    %1027 = vmatprep.subr.mxu0 0.0
    %1028 = vmatpush2.msra.mxu0 0.0
    %1029 = vmatprep.subr.mxu0 0.0
    %1030 = vmatpush2.msra.mxu0 0.0
    %1031 = vmatprep.subr.mxu0 0.0
    %1032 = vmatpush2.msra.mxu0 0.0
    %1033 = vmatprep.subr.mxu0 0.0
    %1034 = vmatpush2.msra.mxu0 0.0
    %1035 = vmatprep.mubr.f32.mxu0 0.0
    %1036 = vmatmul.mubr.f32.gmra.mxu0 %v198
    %v1037 = vpop.f32.mrf.mxu0
    %v1038 = vadd.f32 %v37, %v1037
    %v1039 = vpop.f32.mrf.mxu0
    %1040 = vdwg.mxu0
    %v1041 = vadd.f32 %v669, %v1038
    %1042 = vst [vmem:[#allocation2] sm:$0xf] %v1038
    %v1043 = vld [vmem:[#allocation2] sm:$0xff]
    %1044 = vmatprep.subr.mxu0 0.0
    %1045 = vmatpush1.msra.mxu0 0.0
    %1046 = vmatprep.subr.mxu0 0.0
    %1047 = vmatpush1.msra.mxu0 0.0
    %1048 = vmatprep.subr.mxu0 0.0
    %1049 = vmatpush1.msra.mxu0 0.0
    %1050 = vmatprep.subr.mxu0 0.0
    %1051 = vmatpush1.msra.mxu0 0.0
    %1052 = vmatprep.subr.mxu0 0.0
    %1053 = vmatpush1.msra.mxu0 0.0
    %1054 = vmatprep.subr.mxu0 0.0
    %1055 = vmatpush1.msra.mxu0 0.0
    %1056 = vmatprep.subr.mxu0 0.0
    %1057 = vmatpush1.msra.mxu0 0.0
    %1058 = vmatprep.subr.mxu0 0.0
    %1059 = vmatpush1.msra.mxu0 0.0
    %1060 = vmatprep.subr.mxu0 0.0
    %1061 = vmatpush1.msra.mxu0 0.0
    %1062 = vmatprep.subr.mxu0 0.0
    %1063 = vmatpush1.msra.mxu0 0.0
    %1064 = vmatprep.subr.mxu0 0.0
    %1065 = vmatpush1.msra.mxu0 0.0
    %1066 = vmatprep.subr.mxu0 0.0
    %1067 = vmatpush1.msra.mxu0 0.0
    %1068 = vmatprep.subr.mxu0 0.0
    %1069 = vmatpush1.msra.mxu0 0.0
    %1070 = vmatprep.subr.mxu0 0.0
    %1071 = vmatpush1.msra.mxu0 0.0
    %1072 = vmatprep.subr.mxu0 0.0
    %1073 = vmatpush1.msra.mxu0 0.0
    %1074 = vmatprep.subr.mxu0 0.0
    %1075 = vmatpush1.msra.mxu0 %v1043
    %1076 = vmatprep.subr.mxu0 0.0
    %1077 = vmatpush2.msra.mxu0 0.0
    %1078 = vmatprep.subr.mxu0 0.0
    %1079 = vmatpush2.msra.mxu0 0.0
    %1080 = vmatprep.subr.mxu0 0.0
    %1081 = vmatpush2.msra.mxu0 0.0
    %1082 = vmatprep.subr.mxu0 0.0
    %1083 = vmatpush2.msra.mxu0 0.0
    %1084 = vmatprep.subr.mxu0 0.0
    %1085 = vmatpush2.msra.mxu0 0.0
    %1086 = vmatprep.subr.mxu0 0.0
    %1087 = vmatpush2.msra.mxu0 0.0
    %1088 = vmatprep.subr.mxu0 0.0
    %1089 = vmatpush2.msra.mxu0 0.0
    %1090 = vmatprep.subr.mxu0 0.0
    %1091 = vmatpush2.msra.mxu0 0.0
    %1092 = vmatprep.subr.mxu0 0.0
    %1093 = vmatpush2.msra.mxu0 0.0
    %1094 = vmatprep.subr.mxu0 0.0
    %1095 = vmatpush2.msra.mxu0 0.0
    %1096 = vmatprep.subr.mxu0 0.0
    %1097 = vmatpush2.msra.mxu0 0.0
    %1098 = vmatprep.subr.mxu0 0.0
    %1099 = vmatpush2.msra.mxu0 0.0
    %1100 = vmatprep.subr.mxu0 0.0
    %1101 = vmatpush2.msra.mxu0 0.0
    %1102 = vmatprep.subr.mxu0 0.0
    %1103 = vmatpush2.msra.mxu0 0.0
    %1104 = vmatprep.subr.mxu0 0.0
    %1105 = vmatpush2.msra.mxu0 0.0
    %1106 = vmatprep.subr.mxu0 0.0
    %1107 = vmatpush2.msra.mxu0 0.0
    %1108 = vmatprep.mubr.f32.mxu0 0.0
    %1109 = vmatmul.mubr.f32.gmra.mxu0 %v274
    %v1110 = vpop.f32.mrf.mxu0
    %v1111 = vadd.f32 0.0, %v1110
    %v1112 = vpop.f32.mrf.mxu0
    %1113 = vmatprep.mubr.f32.mxu0 0.0
    %1114 = vmatmul.mubr.f32.gmra.mxu0 %v277
    %v1115 = vpop.f32.mrf.mxu0
    %v1116 = vadd.f32 0.0, %v1115
    %v1117 = vpop.f32.mrf.mxu0
    %1118 = vmatprep.mubr.f32.mxu0 0.0
    %1119 = vmatmul.mubr.f32.gmra.mxu0 %v280
    %v1120 = vpop.f32.mrf.mxu0
    %v1121 = vadd.f32 0.0, %v1120
    %v1122 = vpop.f32.mrf.mxu0
    %1123 = vmatprep.mubr.f32.mxu0 0.0
    %1124 = vmatmul.mubr.f32.gmra.mxu0 %v283
    %v1125 = vpop.f32.mrf.mxu0
    %v1126 = vadd.f32 0.0, %v1125
    %v1127 = vpop.f32.mrf.mxu0
    %1128 = vmatprep.mubr.f32.mxu0 0.0
    %1129 = vmatmul.mubr.f32.gmra.mxu0 %v286
    %v1130 = vpop.f32.mrf.mxu0
    %v1131 = vadd.f32 0.0, %v1130
    %v1132 = vpop.f32.mrf.mxu0
    %1133 = vmatprep.mubr.f32.mxu0 0.0
    %1134 = vmatmul.mubr.f32.gmra.mxu0 %v289
    %v1135 = vpop.f32.mrf.mxu0
    %v1136 = vadd.f32 0.0, %v1135
    %v1137 = vpop.f32.mrf.mxu0
    %1138 = vmatprep.mubr.f32.mxu0 0.0
    %1139 = vmatmul.mubr.f32.gmra.mxu0 %v292
    %v1140 = vpop.f32.mrf.mxu0
    %v1141 = vadd.f32 0.0, %v1140
    %v1142 = vpop.f32.mrf.mxu0
    %1143 = vmatprep.mubr.f32.mxu0 0.0
    %1144 = vmatmul.mubr.f32.gmra.mxu0 %v295
    %v1145 = vpop.f32.mrf.mxu0
    %v1146 = vadd.f32 0.0, %v1145
    %v1147 = vpop.f32.mrf.mxu0
    %1148 = vdwg.mxu0
    %v1149 = vtanh.pop %v1111
    %v1150 = vtanh.pop %v1116
    %v1151 = vtanh.pop %v1121
    %v1152 = vtanh.pop %v1126
    %v1153 = vtanh.pop %v1131
    %v1154 = vtanh.pop %v1136
    %v1155 = vtanh.pop %v1141
    %v1156 = vtanh.pop %v1146
    %1157 = vmatprep.subr.mxu0 0.0
    %1158 = vmatpush1.msra.mxu0 0.0
    %1159 = vmatprep.subr.mxu0 0.0
    %1160 = vmatpush1.msra.mxu0 0.0
    %1161 = vmatprep.subr.mxu0 0.0
    %1162 = vmatpush1.msra.mxu0 0.0
    %1163 = vmatprep.subr.mxu0 0.0
    %1164 = vmatpush1.msra.mxu0 0.0
    %1165 = vmatprep.subr.mxu0 0.0
    %1166 = vmatpush1.msra.mxu0 0.0
    %1167 = vmatprep.subr.mxu0 0.0
    %1168 = vmatpush1.msra.mxu0 0.0
    %1169 = vmatprep.subr.mxu0 0.0
    %1170 = vmatpush1.msra.mxu0 0.0
    %1171 = vmatprep.subr.mxu0 0.0
    %1172 = vmatpush1.msra.mxu0 0.0
    %1173 = vmatprep.subr.mxu0 0.0
    %1174 = vmatpush1.msra.mxu0 %v1156
    %1175 = vmatprep.subr.mxu0 0.0
    %1176 = vmatpush1.msra.mxu0 %v1155
    %1177 = vmatprep.subr.mxu0 0.0
    %1178 = vmatpush1.msra.mxu0 %v1154
    %1179 = vmatprep.subr.mxu0 0.0
    %1180 = vmatpush1.msra.mxu0 %v1153
    %1181 = vmatprep.subr.mxu0 0.0
    %1182 = vmatpush1.msra.mxu0 %v1152
    %1183 = vmatprep.subr.mxu0 0.0
    %1184 = vmatpush1.msra.mxu0 %v1151
    %1185 = vmatprep.subr.mxu0 0.0
    %1186 = vmatpush1.msra.mxu0 %v1150
    %1187 = vmatprep.subr.mxu0 0.0
    %1188 = vmatpush1.msra.mxu0 %v1149
    %1189 = vmatprep.subr.mxu0 0.0
    %1190 = vmatpush2.msra.mxu0 0.0
    %1191 = vmatprep.subr.mxu0 0.0
    %1192 = vmatpush2.msra.mxu0 0.0
    %1193 = vmatprep.subr.mxu0 0.0
    %1194 = vmatpush2.msra.mxu0 0.0
    %1195 = vmatprep.subr.mxu0 0.0
    %1196 = vmatpush2.msra.mxu0 0.0
    %1197 = vmatprep.subr.mxu0 0.0
    %1198 = vmatpush2.msra.mxu0 0.0
    %1199 = vmatprep.subr.mxu0 0.0
    %1200 = vmatpush2.msra.mxu0 0.0
    %1201 = vmatprep.subr.mxu0 0.0
    %1202 = vmatpush2.msra.mxu0 0.0
    %1203 = vmatprep.subr.mxu0 0.0
    %1204 = vmatpush2.msra.mxu0 0.0
    %1205 = vmatprep.subr.mxu0 0.0
    %1206 = vmatpush2.msra.mxu0 0.0
    %1207 = vmatprep.subr.mxu0 0.0
    %1208 = vmatpush2.msra.mxu0 0.0
    %1209 = vmatprep.subr.mxu0 0.0
    %1210 = vmatpush2.msra.mxu0 0.0
    %1211 = vmatprep.subr.mxu0 0.0
    %1212 = vmatpush2.msra.mxu0 0.0
    %1213 = vmatprep.subr.mxu0 0.0
    %1214 = vmatpush2.msra.mxu0 0.0
    %1215 = vmatprep.subr.mxu0 0.0
    %1216 = vmatpush2.msra.mxu0 0.0
    %1217 = vmatprep.subr.mxu0 0.0
    %1218 = vmatpush2.msra.mxu0 0.0
    %1219 = vmatprep.subr.mxu0 0.0
    %1220 = vmatpush2.msra.mxu0 0.0
    %1221 = vmatprep.mubr.f32.mxu0 0.0
    %1222 = vmatmul.mubr.f32.gmra.mxu0 %v411
    %v1223 = vpop.f32.mrf.mxu0
    %v1224 = vadd.f32 %v43, %v1223
    %v1225 = vpop.f32.mrf.mxu0
    %1226 = vdwg.mxu0
    %v1227 = vtanh.pop %v1224
    %1228 = vst [vmem:[#allocation2 + $0x4] sm:$0x3] %v1227
    %v1229 = vld [vmem:[#allocation2] sm:$0xff]
    %1230 = vmatprep.subr.mxu0 0.0
    %1231 = vmatpush1.msra.mxu0 0.0
    %1232 = vmatprep.subr.mxu0 0.0
    %1233 = vmatpush1.msra.mxu0 0.0
    %1234 = vmatprep.subr.mxu0 0.0
    %1235 = vmatpush1.msra.mxu0 0.0
    %1236 = vmatprep.subr.mxu0 0.0
    %1237 = vmatpush1.msra.mxu0 0.0
    %1238 = vmatprep.subr.mxu0 0.0
    %1239 = vmatpush1.msra.mxu0 0.0
    %1240 = vmatprep.subr.mxu0 0.0
    %1241 = vmatpush1.msra.mxu0 0.0
    %1242 = vmatprep.subr.mxu0 0.0
    %1243 = vmatpush1.msra.mxu0 0.0
    %1244 = vmatprep.subr.mxu0 0.0
    %1245 = vmatpush1.msra.mxu0 0.0
    %1246 = vmatprep.subr.mxu0 0.0
    %1247 = vmatpush1.msra.mxu0 0.0
    %1248 = vmatprep.subr.mxu0 0.0
    %1249 = vmatpush1.msra.mxu0 0.0
    %1250 = vmatprep.subr.mxu0 0.0
    %1251 = vmatpush1.msra.mxu0 0.0
    %1252 = vmatprep.subr.mxu0 0.0
    %1253 = vmatpush1.msra.mxu0 0.0
    %1254 = vmatprep.subr.mxu0 0.0
    %1255 = vmatpush1.msra.mxu0 0.0
    %1256 = vmatprep.subr.mxu0 0.0
    %1257 = vmatpush1.msra.mxu0 0.0
    %1258 = vmatprep.subr.mxu0 0.0
    %1259 = vmatpush1.msra.mxu0 0.0
    %1260 = vmatprep.subr.mxu0 0.0
    %1261 = vmatpush1.msra.mxu0 %v1229
    %1262 = vmatprep.subr.mxu0 0.0
    %1263 = vmatpush2.msra.mxu0 0.0
    %1264 = vmatprep.subr.mxu0 0.0
    %1265 = vmatpush2.msra.mxu0 0.0
    %1266 = vmatprep.subr.mxu0 0.0
    %1267 = vmatpush2.msra.mxu0 0.0
    %1268 = vmatprep.subr.mxu0 0.0
    %1269 = vmatpush2.msra.mxu0 0.0
    %1270 = vmatprep.subr.mxu0 0.0
    %1271 = vmatpush2.msra.mxu0 0.0
    %1272 = vmatprep.subr.mxu0 0.0
    %1273 = vmatpush2.msra.mxu0 0.0
    %1274 = vmatprep.subr.mxu0 0.0
    %1275 = vmatpush2.msra.mxu0 0.0
    %1276 = vmatprep.subr.mxu0 0.0
    %1277 = vmatpush2.msra.mxu0 0.0
    %1278 = vmatprep.subr.mxu0 0.0
    %1279 = vmatpush2.msra.mxu0 0.0
    %1280 = vmatprep.subr.mxu0 0.0
    %1281 = vmatpush2.msra.mxu0 0.0
    %1282 = vmatprep.subr.mxu0 0.0
    %1283 = vmatpush2.msra.mxu0 0.0
    %1284 = vmatprep.subr.mxu0 0.0
    %1285 = vmatpush2.msra.mxu0 0.0
    %1286 = vmatprep.subr.mxu0 0.0
    %1287 = vmatpush2.msra.mxu0 0.0
    %1288 = vmatprep.subr.mxu0 0.0
    %1289 = vmatpush2.msra.mxu0 0.0
    %1290 = vmatprep.subr.mxu0 0.0
    %1291 = vmatpush2.msra.mxu0 0.0
    %1292 = vmatprep.subr.mxu0 0.0
    %1293 = vmatpush2.msra.mxu0 0.0
    %1294 = vmatprep.mubr.f32.mxu0 0.0
    %1295 = vmatmul.mubr.f32.gmra.mxu0 %v60
    %v1296 = vpop.f32.mrf.mxu0
    %v1297 = vadd.f32 0.0, %v1296
    %v1298 = vpop.f32.mrf.mxu0
    %1299 = vmatprep.mubr.f32.mxu0 0.0
    %1300 = vmatmul.mubr.f32.gmra.mxu0 %v63
    %v1301 = vpop.f32.mrf.mxu0
    %v1302 = vadd.f32 0.0, %v1301
    %v1303 = vpop.f32.mrf.mxu0
    %1304 = vmatprep.mubr.f32.mxu0 0.0
    %1305 = vmatmul.mubr.f32.gmra.mxu0 %v66
    %v1306 = vpop.f32.mrf.mxu0
    %v1307 = vadd.f32 0.0, %v1306
    %v1308 = vpop.f32.mrf.mxu0
    %1309 = vmatprep.mubr.f32.mxu0 0.0
    %1310 = vmatmul.mubr.f32.gmra.mxu0 %v69
    %v1311 = vpop.f32.mrf.mxu0
    %v1312 = vadd.f32 0.0, %v1311
    %v1313 = vpop.f32.mrf.mxu0
    %1314 = vmatprep.mubr.f32.mxu0 0.0
    %1315 = vmatmul.mubr.f32.gmra.mxu0 %v72
    %v1316 = vpop.f32.mrf.mxu0
    %v1317 = vadd.f32 0.0, %v1316
    %v1318 = vpop.f32.mrf.mxu0
    %1319 = vmatprep.mubr.f32.mxu0 0.0
    %1320 = vmatmul.mubr.f32.gmra.mxu0 %v75
    %v1321 = vpop.f32.mrf.mxu0
    %v1322 = vadd.f32 0.0, %v1321
    %v1323 = vpop.f32.mrf.mxu0
    %1324 = vmatprep.mubr.f32.mxu0 0.0
    %1325 = vmatmul.mubr.f32.gmra.mxu0 %v78
    %v1326 = vpop.f32.mrf.mxu0
    %v1327 = vadd.f32 0.0, %v1326
    %v1328 = vpop.f32.mrf.mxu0
    %1329 = vmatprep.mubr.f32.mxu0 0.0
    %1330 = vmatmul.mubr.f32.gmra.mxu0 %v81
    %v1331 = vpop.f32.mrf.mxu0
    %v1332 = vadd.f32 0.0, %v1331
    %v1333 = vpop.f32.mrf.mxu0
    %1334 = vdwg.mxu0
    %v1335 = vtanh.pop %v1297
    %v1336 = vtanh.pop %v1302
    %v1337 = vtanh.pop %v1307
    %v1338 = vtanh.pop %v1312
    %v1339 = vtanh.pop %v1317
    %v1340 = vtanh.pop %v1322
    %v1341 = vtanh.pop %v1327
    %v1342 = vtanh.pop %v1332
    %1343 = vmatprep.subr.mxu0 0.0
    %1344 = vmatpush1.msra.mxu0 0.0
    %1345 = vmatprep.subr.mxu0 0.0
    %1346 = vmatpush1.msra.mxu0 0.0
    %1347 = vmatprep.subr.mxu0 0.0
    %1348 = vmatpush1.msra.mxu0 0.0
    %1349 = vmatprep.subr.mxu0 0.0
    %1350 = vmatpush1.msra.mxu0 0.0
    %1351 = vmatprep.subr.mxu0 0.0
    %1352 = vmatpush1.msra.mxu0 0.0
    %1353 = vmatprep.subr.mxu0 0.0
    %1354 = vmatpush1.msra.mxu0 0.0
    %1355 = vmatprep.subr.mxu0 0.0
    %1356 = vmatpush1.msra.mxu0 0.0
    %1357 = vmatprep.subr.mxu0 0.0
    %1358 = vmatpush1.msra.mxu0 0.0
    %1359 = vmatprep.subr.mxu0 0.0
    %1360 = vmatpush1.msra.mxu0 %v1342
    %1361 = vmatprep.subr.mxu0 0.0
    %1362 = vmatpush1.msra.mxu0 %v1341
    %1363 = vmatprep.subr.mxu0 0.0
    %1364 = vmatpush1.msra.mxu0 %v1340
    %1365 = vmatprep.subr.mxu0 0.0
    %1366 = vmatpush1.msra.mxu0 %v1339
    %1367 = vmatprep.subr.mxu0 0.0
    %1368 = vmatpush1.msra.mxu0 %v1338
    %1369 = vmatprep.subr.mxu0 0.0
    %1370 = vmatpush1.msra.mxu0 %v1337
    %1371 = vmatprep.subr.mxu0 0.0
    %1372 = vmatpush1.msra.mxu0 %v1336
    %1373 = vmatprep.subr.mxu0 0.0
    %1374 = vmatpush1.msra.mxu0 %v1335
    %1375 = vmatprep.subr.mxu0 0.0
    %1376 = vmatpush2.msra.mxu0 0.0
    %1377 = vmatprep.subr.mxu0 0.0
    %1378 = vmatpush2.msra.mxu0 0.0
    %1379 = vmatprep.subr.mxu0 0.0
    %1380 = vmatpush2.msra.mxu0 0.0
    %1381 = vmatprep.subr.mxu0 0.0
    %1382 = vmatpush2.msra.mxu0 0.0
    %1383 = vmatprep.subr.mxu0 0.0
    %1384 = vmatpush2.msra.mxu0 0.0
    %1385 = vmatprep.subr.mxu0 0.0
    %1386 = vmatpush2.msra.mxu0 0.0
    %1387 = vmatprep.subr.mxu0 0.0
    %1388 = vmatpush2.msra.mxu0 0.0
    %1389 = vmatprep.subr.mxu0 0.0
    %1390 = vmatpush2.msra.mxu0 0.0
    %1391 = vmatprep.subr.mxu0 0.0
    %1392 = vmatpush2.msra.mxu0 0.0
    %1393 = vmatprep.subr.mxu0 0.0
    %1394 = vmatpush2.msra.mxu0 0.0
    %1395 = vmatprep.subr.mxu0 0.0
    %1396 = vmatpush2.msra.mxu0 0.0
    %1397 = vmatprep.subr.mxu0 0.0
    %1398 = vmatpush2.msra.mxu0 0.0
    %1399 = vmatprep.subr.mxu0 0.0
    %1400 = vmatpush2.msra.mxu0 0.0
    %1401 = vmatprep.subr.mxu0 0.0
    %1402 = vmatpush2.msra.mxu0 0.0
    %1403 = vmatprep.subr.mxu0 0.0
    %1404 = vmatpush2.msra.mxu0 0.0
    %1405 = vmatprep.subr.mxu0 0.0
    %1406 = vmatpush2.msra.mxu0 0.0
    %1407 = vmatprep.mubr.f32.mxu0 0.0
    %1408 = vmatmul.mubr.f32.gmra.mxu0 %v198
    %v1409 = vpop.f32.mrf.mxu0
    %v1410 = vadd.f32 %v37, %v1409
    %v1411 = vpop.f32.mrf.mxu0
    %1412 = vdwg.mxu0
    %v1413 = vadd.f32 %v1041, %v1410
    %1414 = vst [vmem:[#allocation2] sm:$0xf] %v1410
    %v1415 = vld [vmem:[#allocation2] sm:$0xff]
    %1416 = vmatprep.subr.mxu0 0.0
    %1417 = vmatpush1.msra.mxu0 0.0
    %1418 = vmatprep.subr.mxu0 0.0
    %1419 = vmatpush1.msra.mxu0 0.0
    %1420 = vmatprep.subr.mxu0 0.0
    %1421 = vmatpush1.msra.mxu0 0.0
    %1422 = vmatprep.subr.mxu0 0.0
    %1423 = vmatpush1.msra.mxu0 0.0
    %1424 = vmatprep.subr.mxu0 0.0
    %1425 = vmatpush1.msra.mxu0 0.0
    %1426 = vmatprep.subr.mxu0 0.0
    %1427 = vmatpush1.msra.mxu0 0.0
    %1428 = vmatprep.subr.mxu0 0.0
    %1429 = vmatpush1.msra.mxu0 0.0
    %1430 = vmatprep.subr.mxu0 0.0
    %1431 = vmatpush1.msra.mxu0 0.0
    %1432 = vmatprep.subr.mxu0 0.0
    %1433 = vmatpush1.msra.mxu0 0.0
    %1434 = vmatprep.subr.mxu0 0.0
    %1435 = vmatpush1.msra.mxu0 0.0
    %1436 = vmatprep.subr.mxu0 0.0
    %1437 = vmatpush1.msra.mxu0 0.0
    %1438 = vmatprep.subr.mxu0 0.0
    %1439 = vmatpush1.msra.mxu0 0.0
    %1440 = vmatprep.subr.mxu0 0.0
    %1441 = vmatpush1.msra.mxu0 0.0
    %1442 = vmatprep.subr.mxu0 0.0
    %1443 = vmatpush1.msra.mxu0 0.0
    %1444 = vmatprep.subr.mxu0 0.0
    %1445 = vmatpush1.msra.mxu0 0.0
    %1446 = vmatprep.subr.mxu0 0.0
    %1447 = vmatpush1.msra.mxu0 %v1415
    %1448 = vmatprep.subr.mxu0 0.0
    %1449 = vmatpush2.msra.mxu0 0.0
    %1450 = vmatprep.subr.mxu0 0.0
    %1451 = vmatpush2.msra.mxu0 0.0
    %1452 = vmatprep.subr.mxu0 0.0
    %1453 = vmatpush2.msra.mxu0 0.0
    %1454 = vmatprep.subr.mxu0 0.0
    %1455 = vmatpush2.msra.mxu0 0.0
    %1456 = vmatprep.subr.mxu0 0.0
    %1457 = vmatpush2.msra.mxu0 0.0
    %1458 = vmatprep.subr.mxu0 0.0
    %1459 = vmatpush2.msra.mxu0 0.0
    %1460 = vmatprep.subr.mxu0 0.0
    %1461 = vmatpush2.msra.mxu0 0.0
    %1462 = vmatprep.subr.mxu0 0.0
    %1463 = vmatpush2.msra.mxu0 0.0
    %1464 = vmatprep.subr.mxu0 0.0
    %1465 = vmatpush2.msra.mxu0 0.0
    %1466 = vmatprep.subr.mxu0 0.0
    %1467 = vmatpush2.msra.mxu0 0.0
    %1468 = vmatprep.subr.mxu0 0.0
    %1469 = vmatpush2.msra.mxu0 0.0
    %1470 = vmatprep.subr.mxu0 0.0
    %1471 = vmatpush2.msra.mxu0 0.0
    %1472 = vmatprep.subr.mxu0 0.0
    %1473 = vmatpush2.msra.mxu0 0.0
    %1474 = vmatprep.subr.mxu0 0.0
    %1475 = vmatpush2.msra.mxu0 0.0
    %1476 = vmatprep.subr.mxu0 0.0
    %1477 = vmatpush2.msra.mxu0 0.0
    %1478 = vmatprep.subr.mxu0 0.0
    %1479 = vmatpush2.msra.mxu0 0.0
    %1480 = vmatprep.mubr.f32.mxu0 0.0
    %1481 = vmatmul.mubr.f32.gmra.mxu0 %v274
    %v1482 = vpop.f32.mrf.mxu0
    %v1483 = vadd.f32 0.0, %v1482
    %v1484 = vpop.f32.mrf.mxu0
    %1485 = vmatprep.mubr.f32.mxu0 0.0
    %1486 = vmatmul.mubr.f32.gmra.mxu0 %v277
    %v1487 = vpop.f32.mrf.mxu0
    %v1488 = vadd.f32 0.0, %v1487
    %v1489 = vpop.f32.mrf.mxu0
    %1490 = vmatprep.mubr.f32.mxu0 0.0
    %1491 = vmatmul.mubr.f32.gmra.mxu0 %v280
    %v1492 = vpop.f32.mrf.mxu0
    %v1493 = vadd.f32 0.0, %v1492
    %v1494 = vpop.f32.mrf.mxu0
    %1495 = vmatprep.mubr.f32.mxu0 0.0
    %1496 = vmatmul.mubr.f32.gmra.mxu0 %v283
    %v1497 = vpop.f32.mrf.mxu0
    %v1498 = vadd.f32 0.0, %v1497
    %v1499 = vpop.f32.mrf.mxu0
    %1500 = vmatprep.mubr.f32.mxu0 0.0
    %1501 = vmatmul.mubr.f32.gmra.mxu0 %v286
    %v1502 = vpop.f32.mrf.mxu0
    %v1503 = vadd.f32 0.0, %v1502
    %v1504 = vpop.f32.mrf.mxu0
    %1505 = vmatprep.mubr.f32.mxu0 0.0
    %1506 = vmatmul.mubr.f32.gmra.mxu0 %v289
    %v1507 = vpop.f32.mrf.mxu0
    %v1508 = vadd.f32 0.0, %v1507
    %v1509 = vpop.f32.mrf.mxu0
    %1510 = vmatprep.mubr.f32.mxu0 0.0
    %1511 = vmatmul.mubr.f32.gmra.mxu0 %v292
    %v1512 = vpop.f32.mrf.mxu0
    %v1513 = vadd.f32 0.0, %v1512
    %v1514 = vpop.f32.mrf.mxu0
    %1515 = vmatprep.mubr.f32.mxu0 0.0
    %1516 = vmatmul.mubr.f32.gmra.mxu0 %v295
    %v1517 = vpop.f32.mrf.mxu0
    %v1518 = vadd.f32 0.0, %v1517
    %v1519 = vpop.f32.mrf.mxu0
    %1520 = vdwg.mxu0
    %v1521 = vtanh.pop %v1483
    %v1522 = vtanh.pop %v1488
    %v1523 = vtanh.pop %v1493
    %v1524 = vtanh.pop %v1498
    %v1525 = vtanh.pop %v1503
    %v1526 = vtanh.pop %v1508
    %v1527 = vtanh.pop %v1513
    %v1528 = vtanh.pop %v1518
    %1529 = vmatprep.subr.mxu0 0.0
    %1530 = vmatpush1.msra.mxu0 0.0
    %1531 = vmatprep.subr.mxu0 0.0
    %1532 = vmatpush1.msra.mxu0 0.0
    %1533 = vmatprep.subr.mxu0 0.0
    %1534 = vmatpush1.msra.mxu0 0.0
    %1535 = vmatprep.subr.mxu0 0.0
    %1536 = vmatpush1.msra.mxu0 0.0
    %1537 = vmatprep.subr.mxu0 0.0
    %1538 = vmatpush1.msra.mxu0 0.0
    %1539 = vmatprep.subr.mxu0 0.0
    %1540 = vmatpush1.msra.mxu0 0.0
    %1541 = vmatprep.subr.mxu0 0.0
    %1542 = vmatpush1.msra.mxu0 0.0
    %1543 = vmatprep.subr.mxu0 0.0
    %1544 = vmatpush1.msra.mxu0 0.0
    %1545 = vmatprep.subr.mxu0 0.0
    %1546 = vmatpush1.msra.mxu0 %v1528
    %1547 = vmatprep.subr.mxu0 0.0
    %1548 = vmatpush1.msra.mxu0 %v1527
    %1549 = vmatprep.subr.mxu0 0.0
    %1550 = vmatpush1.msra.mxu0 %v1526
    %1551 = vmatprep.subr.mxu0 0.0
    %1552 = vmatpush1.msra.mxu0 %v1525
    %1553 = vmatprep.subr.mxu0 0.0
    %1554 = vmatpush1.msra.mxu0 %v1524
    %1555 = vmatprep.subr.mxu0 0.0
    %1556 = vmatpush1.msra.mxu0 %v1523
    %1557 = vmatprep.subr.mxu0 0.0
    %1558 = vmatpush1.msra.mxu0 %v1522
    %1559 = vmatprep.subr.mxu0 0.0
    %1560 = vmatpush1.msra.mxu0 %v1521
    %1561 = vmatprep.subr.mxu0 0.0
    %1562 = vmatpush2.msra.mxu0 0.0
    %1563 = vmatprep.subr.mxu0 0.0
    %1564 = vmatpush2.msra.mxu0 0.0
    %1565 = vmatprep.subr.mxu0 0.0
    %1566 = vmatpush2.msra.mxu0 0.0
    %1567 = vmatprep.subr.mxu0 0.0
    %1568 = vmatpush2.msra.mxu0 0.0
    %1569 = vmatprep.subr.mxu0 0.0
    %1570 = vmatpush2.msra.mxu0 0.0
    %1571 = vmatprep.subr.mxu0 0.0
    %1572 = vmatpush2.msra.mxu0 0.0
    %1573 = vmatprep.subr.mxu0 0.0
    %1574 = vmatpush2.msra.mxu0 0.0
    %1575 = vmatprep.subr.mxu0 0.0
    %1576 = vmatpush2.msra.mxu0 0.0
    %1577 = vmatprep.subr.mxu0 0.0
    %1578 = vmatpush2.msra.mxu0 0.0
    %1579 = vmatprep.subr.mxu0 0.0
    %1580 = vmatpush2.msra.mxu0 0.0
    %1581 = vmatprep.subr.mxu0 0.0
    %1582 = vmatpush2.msra.mxu0 0.0
    %1583 = vmatprep.subr.mxu0 0.0
    %1584 = vmatpush2.msra.mxu0 0.0
    %1585 = vmatprep.subr.mxu0 0.0
    %1586 = vmatpush2.msra.mxu0 0.0
    %1587 = vmatprep.subr.mxu0 0.0
    %1588 = vmatpush2.msra.mxu0 0.0
    %1589 = vmatprep.subr.mxu0 0.0
    %1590 = vmatpush2.msra.mxu0 0.0
    %1591 = vmatprep.subr.mxu0 0.0
    %1592 = vmatpush2.msra.mxu0 0.0
    %1593 = vmatprep.mubr.f32.mxu0 0.0
    %1594 = vmatmul.mubr.f32.gmra.mxu0 %v411
    %v1595 = vpop.f32.mrf.mxu0
    %v1596 = vadd.f32 %v43, %v1595
    %v1597 = vpop.f32.mrf.mxu0
    %1598 = vdwg.mxu0
    %v1599 = vtanh.pop %v1596
    %1600 = vst [vmem:[#allocation2 + $0x4] sm:$0x3] %v1599
    %v1601 = vld [vmem:[#allocation2] sm:$0xff]
    %1602 = vmatprep.subr.mxu0 0.0
    %1603 = vmatpush1.msra.mxu0 0.0
    %1604 = vmatprep.subr.mxu0 0.0
    %1605 = vmatpush1.msra.mxu0 0.0
    %1606 = vmatprep.subr.mxu0 0.0
    %1607 = vmatpush1.msra.mxu0 0.0
    %1608 = vmatprep.subr.mxu0 0.0
    %1609 = vmatpush1.msra.mxu0 0.0
    %1610 = vmatprep.subr.mxu0 0.0
    %1611 = vmatpush1.msra.mxu0 0.0
    %1612 = vmatprep.subr.mxu0 0.0
    %1613 = vmatpush1.msra.mxu0 0.0
    %1614 = vmatprep.subr.mxu0 0.0
    %1615 = vmatpush1.msra.mxu0 0.0
    %1616 = vmatprep.subr.mxu0 0.0
    %1617 = vmatpush1.msra.mxu0 0.0
    %1618 = vmatprep.subr.mxu0 0.0
    %1619 = vmatpush1.msra.mxu0 0.0
    %1620 = vmatprep.subr.mxu0 0.0
    %1621 = vmatpush1.msra.mxu0 0.0
    %1622 = vmatprep.subr.mxu0 0.0
    %1623 = vmatpush1.msra.mxu0 0.0
    %1624 = vmatprep.subr.mxu0 0.0
    %1625 = vmatpush1.msra.mxu0 0.0
    %1626 = vmatprep.subr.mxu0 0.0
    %1627 = vmatpush1.msra.mxu0 0.0
    %1628 = vmatprep.subr.mxu0 0.0
    %1629 = vmatpush1.msra.mxu0 0.0
    %1630 = vmatprep.subr.mxu0 0.0
    %1631 = vmatpush1.msra.mxu0 0.0
    %1632 = vmatprep.subr.mxu0 0.0
    %1633 = vmatpush1.msra.mxu0 %v1601
    %1634 = vmatprep.subr.mxu0 0.0
    %1635 = vmatpush2.msra.mxu0 0.0
    %1636 = vmatprep.subr.mxu0 0.0
    %1637 = vmatpush2.msra.mxu0 0.0
    %1638 = vmatprep.subr.mxu0 0.0
    %1639 = vmatpush2.msra.mxu0 0.0
    %1640 = vmatprep.subr.mxu0 0.0
    %1641 = vmatpush2.msra.mxu0 0.0
    %1642 = vmatprep.subr.mxu0 0.0
    %1643 = vmatpush2.msra.mxu0 0.0
    %1644 = vmatprep.subr.mxu0 0.0
    %1645 = vmatpush2.msra.mxu0 0.0
    %1646 = vmatprep.subr.mxu0 0.0
    %1647 = vmatpush2.msra.mxu0 0.0
    %1648 = vmatprep.subr.mxu0 0.0
    %1649 = vmatpush2.msra.mxu0 0.0
    %1650 = vmatprep.subr.mxu0 0.0
    %1651 = vmatpush2.msra.mxu0 0.0
    %1652 = vmatprep.subr.mxu0 0.0
    %1653 = vmatpush2.msra.mxu0 0.0
    %1654 = vmatprep.subr.mxu0 0.0
    %1655 = vmatpush2.msra.mxu0 0.0
    %1656 = vmatprep.subr.mxu0 0.0
    %1657 = vmatpush2.msra.mxu0 0.0
    %1658 = vmatprep.subr.mxu0 0.0
    %1659 = vmatpush2.msra.mxu0 0.0
    %1660 = vmatprep.subr.mxu0 0.0
    %1661 = vmatpush2.msra.mxu0 0.0
    %1662 = vmatprep.subr.mxu0 0.0
    %1663 = vmatpush2.msra.mxu0 0.0
    %1664 = vmatprep.subr.mxu0 0.0
    %1665 = vmatpush2.msra.mxu0 0.0
    %1666 = vmatprep.mubr.f32.mxu0 0.0
    %1667 = vmatmul.mubr.f32.gmra.mxu0 %v60
    %v1668 = vpop.f32.mrf.mxu0
    %v1669 = vadd.f32 0.0, %v1668
    %v1670 = vpop.f32.mrf.mxu0
    %1671 = vmatprep.mubr.f32.mxu0 0.0
    %1672 = vmatmul.mubr.f32.gmra.mxu0 %v63
    %v1673 = vpop.f32.mrf.mxu0
    %v1674 = vadd.f32 0.0, %v1673
    %v1675 = vpop.f32.mrf.mxu0
    %1676 = vmatprep.mubr.f32.mxu0 0.0
    %1677 = vmatmul.mubr.f32.gmra.mxu0 %v66
    %v1678 = vpop.f32.mrf.mxu0
    %v1679 = vadd.f32 0.0, %v1678
    %v1680 = vpop.f32.mrf.mxu0
    %1681 = vmatprep.mubr.f32.mxu0 0.0
    %1682 = vmatmul.mubr.f32.gmra.mxu0 %v69
    %v1683 = vpop.f32.mrf.mxu0
    %v1684 = vadd.f32 0.0, %v1683
    %v1685 = vpop.f32.mrf.mxu0
    %1686 = vmatprep.mubr.f32.mxu0 0.0
    %1687 = vmatmul.mubr.f32.gmra.mxu0 %v72
    %v1688 = vpop.f32.mrf.mxu0
    %v1689 = vadd.f32 0.0, %v1688
    %v1690 = vpop.f32.mrf.mxu0
    %1691 = vmatprep.mubr.f32.mxu0 0.0
    %1692 = vmatmul.mubr.f32.gmra.mxu0 %v75
    %v1693 = vpop.f32.mrf.mxu0
    %v1694 = vadd.f32 0.0, %v1693
    %v1695 = vpop.f32.mrf.mxu0
    %1696 = vmatprep.mubr.f32.mxu0 0.0
    %1697 = vmatmul.mubr.f32.gmra.mxu0 %v78
    %v1698 = vpop.f32.mrf.mxu0
    %v1699 = vadd.f32 0.0, %v1698
    %v1700 = vpop.f32.mrf.mxu0
    %1701 = vmatprep.mubr.f32.mxu0 0.0
    %1702 = vmatmul.mubr.f32.gmra.mxu0 %v81
    %v1703 = vpop.f32.mrf.mxu0
    %v1704 = vadd.f32 0.0, %v1703
    %v1705 = vpop.f32.mrf.mxu0
    %1706 = vdwg.mxu0
    %v1707 = vtanh.pop %v1669
    %v1708 = vtanh.pop %v1674
    %v1709 = vtanh.pop %v1679
    %v1710 = vtanh.pop %v1684
    %v1711 = vtanh.pop %v1689
    %v1712 = vtanh.pop %v1694
    %v1713 = vtanh.pop %v1699
    %v1714 = vtanh.pop %v1704
    %1715 = vmatprep.subr.mxu0 0.0
    %1716 = vmatpush1.msra.mxu0 0.0
    %1717 = vmatprep.subr.mxu0 0.0
    %1718 = vmatpush1.msra.mxu0 0.0
    %1719 = vmatprep.subr.mxu0 0.0
    %1720 = vmatpush1.msra.mxu0 0.0
    %1721 = vmatprep.subr.mxu0 0.0
    %1722 = vmatpush1.msra.mxu0 0.0
    %1723 = vmatprep.subr.mxu0 0.0
    %1724 = vmatpush1.msra.mxu0 0.0
    %1725 = vmatprep.subr.mxu0 0.0
    %1726 = vmatpush1.msra.mxu0 0.0
    %1727 = vmatprep.subr.mxu0 0.0
    %1728 = vmatpush1.msra.mxu0 0.0
    %1729 = vmatprep.subr.mxu0 0.0
    %1730 = vmatpush1.msra.mxu0 0.0
    %1731 = vmatprep.subr.mxu0 0.0
    %1732 = vmatpush1.msra.mxu0 %v1714
    %1733 = vmatprep.subr.mxu0 0.0
    %1734 = vmatpush1.msra.mxu0 %v1713
    %1735 = vmatprep.subr.mxu0 0.0
    %1736 = vmatpush1.msra.mxu0 %v1712
    %1737 = vmatprep.subr.mxu0 0.0
    %1738 = vmatpush1.msra.mxu0 %v1711
    %1739 = vmatprep.subr.mxu0 0.0
    %1740 = vmatpush1.msra.mxu0 %v1710
    %1741 = vmatprep.subr.mxu0 0.0
    %1742 = vmatpush1.msra.mxu0 %v1709
    %1743 = vmatprep.subr.mxu0 0.0
    %1744 = vmatpush1.msra.mxu0 %v1708
    %1745 = vmatprep.subr.mxu0 0.0
    %1746 = vmatpush1.msra.mxu0 %v1707
    %1747 = vmatprep.subr.mxu0 0.0
    %1748 = vmatpush2.msra.mxu0 0.0
    %1749 = vmatprep.subr.mxu0 0.0
    %1750 = vmatpush2.msra.mxu0 0.0
    %1751 = vmatprep.subr.mxu0 0.0
    %1752 = vmatpush2.msra.mxu0 0.0
    %1753 = vmatprep.subr.mxu0 0.0
    %1754 = vmatpush2.msra.mxu0 0.0
    %1755 = vmatprep.subr.mxu0 0.0
    %1756 = vmatpush2.msra.mxu0 0.0
    %1757 = vmatprep.subr.mxu0 0.0
    %1758 = vmatpush2.msra.mxu0 0.0
    %1759 = vmatprep.subr.mxu0 0.0
    %1760 = vmatpush2.msra.mxu0 0.0
    %1761 = vmatprep.subr.mxu0 0.0
    %1762 = vmatpush2.msra.mxu0 0.0
    %1763 = vmatprep.subr.mxu0 0.0
    %1764 = vmatpush2.msra.mxu0 0.0
    %1765 = vmatprep.subr.mxu0 0.0
    %1766 = vmatpush2.msra.mxu0 0.0
    %1767 = vmatprep.subr.mxu0 0.0
    %1768 = vmatpush2.msra.mxu0 0.0
    %1769 = vmatprep.subr.mxu0 0.0
    %1770 = vmatpush2.msra.mxu0 0.0
    %1771 = vmatprep.subr.mxu0 0.0
    %1772 = vmatpush2.msra.mxu0 0.0
    %1773 = vmatprep.subr.mxu0 0.0
    %1774 = vmatpush2.msra.mxu0 0.0
    %1775 = vmatprep.subr.mxu0 0.0
    %1776 = vmatpush2.msra.mxu0 0.0
    %1777 = vmatprep.subr.mxu0 0.0
    %1778 = vmatpush2.msra.mxu0 0.0
    %1779 = vmatprep.mubr.f32.mxu0 0.0
    %1780 = vmatmul.mubr.f32.gmra.mxu0 %v198
    %v1781 = vpop.f32.mrf.mxu0
    %v1782 = vadd.f32 %v37, %v1781
    %v1783 = vpop.f32.mrf.mxu0
    %1784 = vdwg.mxu0
    %v1785 = vadd.f32 %v1413, %v1782
    %1786 = vst [vmem:[#allocation2] sm:$0xf] %v1782
    %v1787 = vld [vmem:[#allocation2] sm:$0xff]
    %1788 = vmatprep.subr.mxu0 0.0
    %1789 = vmatpush1.msra.mxu0 0.0
    %1790 = vmatprep.subr.mxu0 0.0
    %1791 = vmatpush1.msra.mxu0 0.0
    %1792 = vmatprep.subr.mxu0 0.0
    %1793 = vmatpush1.msra.mxu0 0.0
    %1794 = vmatprep.subr.mxu0 0.0
    %1795 = vmatpush1.msra.mxu0 0.0
    %1796 = vmatprep.subr.mxu0 0.0
    %1797 = vmatpush1.msra.mxu0 0.0
    %1798 = vmatprep.subr.mxu0 0.0
    %1799 = vmatpush1.msra.mxu0 0.0
    %1800 = vmatprep.subr.mxu0 0.0
    %1801 = vmatpush1.msra.mxu0 0.0
    %1802 = vmatprep.subr.mxu0 0.0
    %1803 = vmatpush1.msra.mxu0 0.0
    %1804 = vmatprep.subr.mxu0 0.0
    %1805 = vmatpush1.msra.mxu0 0.0
    %1806 = vmatprep.subr.mxu0 0.0
    %1807 = vmatpush1.msra.mxu0 0.0
    %1808 = vmatprep.subr.mxu0 0.0
    %1809 = vmatpush1.msra.mxu0 0.0
    %1810 = vmatprep.subr.mxu0 0.0
    %1811 = vmatpush1.msra.mxu0 0.0
    %1812 = vmatprep.subr.mxu0 0.0
    %1813 = vmatpush1.msra.mxu0 0.0
    %1814 = vmatprep.subr.mxu0 0.0
    %1815 = vmatpush1.msra.mxu0 0.0
    %1816 = vmatprep.subr.mxu0 0.0
    %1817 = vmatpush1.msra.mxu0 0.0
    %1818 = vmatprep.subr.mxu0 0.0
    %1819 = vmatpush1.msra.mxu0 %v1787
    %1820 = vmatprep.subr.mxu0 0.0
    %1821 = vmatpush2.msra.mxu0 0.0
    %1822 = vmatprep.subr.mxu0 0.0
    %1823 = vmatpush2.msra.mxu0 0.0
    %1824 = vmatprep.subr.mxu0 0.0
    %1825 = vmatpush2.msra.mxu0 0.0
    %1826 = vmatprep.subr.mxu0 0.0
    %1827 = vmatpush2.msra.mxu0 0.0
    %1828 = vmatprep.subr.mxu0 0.0
    %1829 = vmatpush2.msra.mxu0 0.0
    %1830 = vmatprep.subr.mxu0 0.0
    %1831 = vmatpush2.msra.mxu0 0.0
    %1832 = vmatprep.subr.mxu0 0.0
    %1833 = vmatpush2.msra.mxu0 0.0
    %1834 = vmatprep.subr.mxu0 0.0
    %1835 = vmatpush2.msra.mxu0 0.0
    %1836 = vmatprep.subr.mxu0 0.0
    %1837 = vmatpush2.msra.mxu0 0.0
    %1838 = vmatprep.subr.mxu0 0.0
    %1839 = vmatpush2.msra.mxu0 0.0
    %1840 = vmatprep.subr.mxu0 0.0
    %1841 = vmatpush2.msra.mxu0 0.0
    %1842 = vmatprep.subr.mxu0 0.0
    %1843 = vmatpush2.msra.mxu0 0.0
    %1844 = vmatprep.subr.mxu0 0.0
    %1845 = vmatpush2.msra.mxu0 0.0
    %1846 = vmatprep.subr.mxu0 0.0
    %1847 = vmatpush2.msra.mxu0 0.0
    %1848 = vmatprep.subr.mxu0 0.0
    %1849 = vmatpush2.msra.mxu0 0.0
    %1850 = vmatprep.subr.mxu0 0.0
    %1851 = vmatpush2.msra.mxu0 0.0
    %1852 = vmatprep.mubr.f32.mxu0 0.0
    %1853 = vmatmul.mubr.f32.gmra.mxu0 %v274
    %v1854 = vpop.f32.mrf.mxu0
    %v1855 = vadd.f32 0.0, %v1854
    %v1856 = vpop.f32.mrf.mxu0
    %1857 = vmatprep.mubr.f32.mxu0 0.0
    %1858 = vmatmul.mubr.f32.gmra.mxu0 %v277
    %v1859 = vpop.f32.mrf.mxu0
    %v1860 = vadd.f32 0.0, %v1859
    %v1861 = vpop.f32.mrf.mxu0
    %1862 = vmatprep.mubr.f32.mxu0 0.0
    %1863 = vmatmul.mubr.f32.gmra.mxu0 %v280
    %v1864 = vpop.f32.mrf.mxu0
    %v1865 = vadd.f32 0.0, %v1864
    %v1866 = vpop.f32.mrf.mxu0
    %1867 = vmatprep.mubr.f32.mxu0 0.0
    %1868 = vmatmul.mubr.f32.gmra.mxu0 %v283
    %v1869 = vpop.f32.mrf.mxu0
    %v1870 = vadd.f32 0.0, %v1869
    %v1871 = vpop.f32.mrf.mxu0
    %1872 = vmatprep.mubr.f32.mxu0 0.0
    %1873 = vmatmul.mubr.f32.gmra.mxu0 %v286
    %v1874 = vpop.f32.mrf.mxu0
    %v1875 = vadd.f32 0.0, %v1874
    %v1876 = vpop.f32.mrf.mxu0
    %1877 = vmatprep.mubr.f32.mxu0 0.0
    %1878 = vmatmul.mubr.f32.gmra.mxu0 %v289
    %v1879 = vpop.f32.mrf.mxu0
    %v1880 = vadd.f32 0.0, %v1879
    %v1881 = vpop.f32.mrf.mxu0
    %1882 = vmatprep.mubr.f32.mxu0 0.0
    %1883 = vmatmul.mubr.f32.gmra.mxu0 %v292
    %v1884 = vpop.f32.mrf.mxu0
    %v1885 = vadd.f32 0.0, %v1884
    %v1886 = vpop.f32.mrf.mxu0
    %1887 = vmatprep.mubr.f32.mxu0 0.0
    %1888 = vmatmul.mubr.f32.gmra.mxu0 %v295
    %v1889 = vpop.f32.mrf.mxu0
    %v1890 = vadd.f32 0.0, %v1889
    %v1891 = vpop.f32.mrf.mxu0
    %1892 = vdwg.mxu0
    %v1893 = vtanh.pop %v1855
    %v1894 = vtanh.pop %v1860
    %v1895 = vtanh.pop %v1865
    %v1896 = vtanh.pop %v1870
    %v1897 = vtanh.pop %v1875
    %v1898 = vtanh.pop %v1880
    %v1899 = vtanh.pop %v1885
    %v1900 = vtanh.pop %v1890
    %1901 = vmatprep.subr.mxu0 0.0
    %1902 = vmatpush1.msra.mxu0 0.0
    %1903 = vmatprep.subr.mxu0 0.0
    %1904 = vmatpush1.msra.mxu0 0.0
    %1905 = vmatprep.subr.mxu0 0.0
    %1906 = vmatpush1.msra.mxu0 0.0
    %1907 = vmatprep.subr.mxu0 0.0
    %1908 = vmatpush1.msra.mxu0 0.0
    %1909 = vmatprep.subr.mxu0 0.0
    %1910 = vmatpush1.msra.mxu0 0.0
    %1911 = vmatprep.subr.mxu0 0.0
    %1912 = vmatpush1.msra.mxu0 0.0
    %1913 = vmatprep.subr.mxu0 0.0
    %1914 = vmatpush1.msra.mxu0 0.0
    %1915 = vmatprep.subr.mxu0 0.0
    %1916 = vmatpush1.msra.mxu0 0.0
    %1917 = vmatprep.subr.mxu0 0.0
    %1918 = vmatpush1.msra.mxu0 %v1900
    %1919 = vmatprep.subr.mxu0 0.0
    %1920 = vmatpush1.msra.mxu0 %v1899
    %1921 = vmatprep.subr.mxu0 0.0
    %1922 = vmatpush1.msra.mxu0 %v1898
    %1923 = vmatprep.subr.mxu0 0.0
    %1924 = vmatpush1.msra.mxu0 %v1897
    %1925 = vmatprep.subr.mxu0 0.0
    %1926 = vmatpush1.msra.mxu0 %v1896
    %1927 = vmatprep.subr.mxu0 0.0
    %1928 = vmatpush1.msra.mxu0 %v1895
    %1929 = vmatprep.subr.mxu0 0.0
    %1930 = vmatpush1.msra.mxu0 %v1894
    %1931 = vmatprep.subr.mxu0 0.0
    %1932 = vmatpush1.msra.mxu0 %v1893
    %1933 = vmatprep.subr.mxu0 0.0
    %1934 = vmatpush2.msra.mxu0 0.0
    %1935 = vmatprep.subr.mxu0 0.0
    %1936 = vmatpush2.msra.mxu0 0.0
    %1937 = vmatprep.subr.mxu0 0.0
    %1938 = vmatpush2.msra.mxu0 0.0
    %1939 = vmatprep.subr.mxu0 0.0
    %1940 = vmatpush2.msra.mxu0 0.0
    %1941 = vmatprep.subr.mxu0 0.0
    %1942 = vmatpush2.msra.mxu0 0.0
    %1943 = vmatprep.subr.mxu0 0.0
    %1944 = vmatpush2.msra.mxu0 0.0
    %1945 = vmatprep.subr.mxu0 0.0
    %1946 = vmatpush2.msra.mxu0 0.0
    %1947 = vmatprep.subr.mxu0 0.0
    %1948 = vmatpush2.msra.mxu0 0.0
    %1949 = vmatprep.subr.mxu0 0.0
    %1950 = vmatpush2.msra.mxu0 0.0
    %1951 = vmatprep.subr.mxu0 0.0
    %1952 = vmatpush2.msra.mxu0 0.0
    %1953 = vmatprep.subr.mxu0 0.0
    %1954 = vmatpush2.msra.mxu0 0.0
    %1955 = vmatprep.subr.mxu0 0.0
    %1956 = vmatpush2.msra.mxu0 0.0
    %1957 = vmatprep.subr.mxu0 0.0
    %1958 = vmatpush2.msra.mxu0 0.0
    %1959 = vmatprep.subr.mxu0 0.0
    %1960 = vmatpush2.msra.mxu0 0.0
    %1961 = vmatprep.subr.mxu0 0.0
    %1962 = vmatpush2.msra.mxu0 0.0
    %1963 = vmatprep.subr.mxu0 0.0
    %1964 = vmatpush2.msra.mxu0 0.0
    %1965 = vmatprep.mubr.f32.mxu0 0.0
    %1966 = vmatmul.mubr.f32.gmra.mxu0 %v411
    %v1967 = vpop.f32.mrf.mxu0
    %v1968 = vadd.f32 %v43, %v1967
    %v1969 = vpop.f32.mrf.mxu0
    %1970 = vdwg.mxu0
    %v1971 = vtanh.pop %v1968
    %1972 = vst [vmem:[#allocation2 + $0x4] sm:$0x3] %v1971
    %v1974 = vrot.slane %v1968, 6
    %v1976 = vadd.f32 %v1785, %v1974
    %v1977 = vsub.f32 0.0, %v1976
    %1978 = vst [vmem:[#allocation3 - $0x4] sm:$0x10] %v1977
    // Predicated region
    $region14: #{tpu_custom_call.1} parent=1 // pred_check
      _
    $region15: #{tpu_custom_call.1} parent=1 // pred_check_branch
      %1980 = sbr.rel (0) target = $region17
    $region16: #{tpu_custom_call.1} parent=1 // pred_region
      %s1982 = ssub.s32 16, 16
      %1983 = vsyncadd [#allocation4], %s1982
      %s1985 = sshll.u32 [#allocation3], 4
      %s1986 = int_to_ptr.vmem [resolvable:$true] %s1985
      %1988 = dma.vmem_to_hbm [thread:$0]  %s1986, 16, %s3, [#allocation4]
    $region17: #{tpu_custom_call.1} parent=1 // pred_fallthru
      _
    // Predicated region
    $region18: #{tpu_custom_call.1} parent=1 // pred_check
      _
    $region19: #{tpu_custom_call.1} parent=1 // pred_check_branch
      %1990 = sbr.rel (0) target = $region21
    $region20: #{tpu_custom_call.1} parent=1 // pred_region
      %1991 = dma.done [#allocation4], 16
    $region21: #{tpu_custom_call.1} parent=1 // pred_fallthru
      _
    %1992 = vsyncpa [#allocation4], 1

</llo_original>
